<compile_context>
chip_gen: v5e
topology: v5e:2x2
jax: 0.10.0
libtpu: 0.0.40
codegen_flags: <defaults>
</compile_context>

<pallas_src>
import functools

import jax
import jax.numpy as jnp
from jax import lax
from jax.experimental import pallas as pl
from jax.experimental.pallas import tpu as pltpu

LANE = 128
SUBLANE = 8


def _round_up(x, m):
    return ((x + m - 1) // m) * m


def _padded_tile_bytes(rows, cols, itemsize):
    """VMEM bytes of a 2-D tile after (sublane, lane) layout padding."""
    return _round_up(max(rows, 1), SUBLANE) * _round_up(max(cols, 1), LANE) * itemsize


def _tpu_chip_info():
    """(vmem_capacity_bytes, is_v5).  Conservative fallbacks if introspection fails."""
    cap = None
    try:
        info = pltpu.get_tpu_info()
        cap = int(getattr(info, "vmem_capacity_bytes", 0)) or None
    except Exception:
        cap = None
    kind = ""
    try:
        kind = jax.devices()[0].device_kind.lower()
    except Exception:
        pass
    if cap is None:
        cap = 64 << 20            # v7x has the smallest per-core VMEM; safe everywhere
    return cap, ("v5" in kind)


# ---------------------------------------------------------------------------
# Plain-JAX glue: farthest point sampling, ball query (indices only)
# ---------------------------------------------------------------------------
def _batched_gather(points, idx):
    """points (B,N,C), idx (B, ...) int -> (B, ..., C)."""
    return jax.vmap(lambda p, i: p[i])(points, idx)


def farthest_point_sampling(xyz, n_out, key):
    """xyz (B,N,3) -> indices (B,n_out).  Random start point (seeded)."""
    B, N, _ = xyz.shape
    start = jax.random.randint(key, (B,), 0, N).astype(jnp.int32)
    idxs = jnp.zeros((B, n_out), jnp.int32).at[:, 0].set(start)
    min_d = jnp.full((B, N), jnp.inf, jnp.float32)

    def body(i, carry):
        min_d, idxs = carry
        last = _batched_gather(xyz, idxs[:, i - 1])            # (B,3)
        d = jnp.sum((xyz - last[:, None, :]) ** 2, axis=-1)    # (B,N)
        min_d = jnp.minimum(min_d, d)
        nxt = jnp.argmax(min_d, axis=-1).astype(jnp.int32)
        idxs = idxs.at[:, i].set(nxt)
        return min_d, idxs

    _, idxs = lax.fori_loop(1, n_out, body, (min_d, idxs))
    return idxs


def ball_query(centroid, xyz, n_sample, radius):
    """First-n_sample-in-index-order neighbours within radius; -1 pads (pytorch3d).

    centroid (B,S,3), xyz (B,N,3) -> idx (B,S,n_sample) int32 (padding = -1)."""
    # TODO(synk): the (B,S,N) pairwise-distance intermediate is still built by XLA;
    # fusing the "first K within radius" select into the Pallas kernel is future work.
    N = xyz.shape[1]
    d2 = jnp.sum((centroid[:, :, None, :] - xyz[:, None, :, :]) ** 2, axis=-1)
    within = d2 < (radius * radius)
    cand = jnp.where(within, jnp.arange(N, dtype=jnp.int32), jnp.int32(N))
    neg_topk, _ = lax.top_k(-cand, n_sample)        # K smallest indices, ascending
    sel = -neg_topk
    return jnp.where(sel == N, jnp.int32(-1), sel)


# ---------------------------------------------------------------------------
# Module
# ---------------------------------------------------------------------------
class SetAbstractionMSGPallas:
    def __init__(self, n_out_point, ball_query_n_sample, ball_query_radius,
                 mlp_layers, key):
        self.n_out_point = int(n_out_point)
        self.ball_query_n_sample = [int(k) for k in ball_query_n_sample]
        self.ball_query_radius = [float(r) for r in ball_query_radius]
        self.mlp_layers = [list(l) for l in mlp_layers]

        # Chip-generation info: VMEM capacity and MXU-native tile width.
        self.vmem_capacity, self._is_v5 = _tpu_chip_info()
        big_mult = 128 if self._is_v5 else 256     # v6e/v7x MXUs are 2x256^2

        # MLP channel widths padded to lane/MXU-friendly multiples.  The FIRST layer's
        # input width stays logical (it matches the gathered feature width); every
        # hidden AND final width is padded so matmul outputs, the K-max and the output
        # stores are all lane dense.  Zero rows/cols keep the numerics identical.
        self.padded_layers = []
        for layers in self.mlp_layers:
            padded = [layers[0]]
            for c in layers[1:]:
                padded.append(128 if c <= 128 else _round_up(c, big_mult))
            self.padded_layers.append(padded)

        # Per-scale 128-aligned lane slots in the padded kernel output.
        self.out_pad_widths = [p[-1] for p in self.padded_layers]
        self.out_offsets = [sum(self.out_pad_widths[:i])
                            for i in range(len(self.out_pad_widths))]
        self.out_padded_total = sum(self.out_pad_widths)

        # Conv1d(k=1) weights as (C_in, C_out), zero-embedded into padded shapes.
        # Weights bf16 (MXU native), biases f32 (bias + ReLU run in f32).
        self.params = []
        for layers, padded in zip(self.mlp_layers, self.padded_layers):
            scale_params = []
            for j in range(len(layers) - 1):
                key, kw, kb = jax.random.split(key, 3)
                w = 0.1 * jax.random.normal(kw, (layers[j], layers[j + 1]), jnp.float32)
                b = 0.1 * jax.random.normal(kb, (layers[j + 1],), jnp.float32)
                wp = (jnp.zeros((padded[j], padded[j + 1]), jnp.float32)
                      .at[:layers[j], :layers[j + 1]].set(w)).astype(jnp.bfloat16)
                bp = jnp.zeros((1, padded[j + 1]), jnp.float32).at[0, :layers[j + 1]].set(b)
                scale_params += [wp, bp]
            self.params.append(scale_params)

    # ----------------------- VMEM budgeting / tiling -------------------------
    def _vmem_estimate(self, tS, C, Np):
        """Per-grid-step VMEM, using (sublane,lane)-padded tile sizes."""
        est = 0
        est += 2 * _padded_tile_bytes(tS, C, 4)                       # centroid tile (x2 buf)
        est += 2 * _padded_tile_bytes(Np, C, 4)                       # raw point-cloud tile
        est += 2 * _padded_tile_bytes(tS, self.out_padded_total, 4)   # output tile
        for K, chans in zip(self.ball_query_n_sample, self.padded_layers):
            rows = tS * K
            est += 2 * _padded_tile_bytes(rows, 1, 4)                 # idx tile (lane padded)
            est += _padded_tile_bytes(rows, Np, 4)                    # one-hot gather matrix
            wide = max(chans[1:])
            est += 2 * _padded_tile_bytes(rows, wide, 4)              # live f32 activations
            est += _padded_tile_bytes(rows, wide, 2)                  # bf16 copy fed to MXU
            for a, b in zip(chans[:-1], chans[1:]):                   # weights single-buffered
                est += _padded_tile_bytes(a, b, 2) + _padded_tile_bytes(1, b, 4)
        return est

    def _headroom(self):
        return max(12 << 20, self.vmem_capacity // 8)

    def _select_tile(self, B, S, C, Np):
        budget = int((self.vmem_capacity - self._headroom()) * 0.75)
        cands = sorted({S} | {t for t in range(8, S, 8) if S % t == 0}, reverse=True)
        fitting = [t for t in cands if self._vmem_estimate(t, C, Np) <= budget] or [cands[-1]]
        # Prefer enough grid steps for pipelining / megacore, MXU-aligned M dims,
        # then the largest tile.
        align = 128 if self._is_v5 else 256

        def score(t):
            steps_ok = (B * (S // t)) >= 8
            m_ok = all((t * k) % align == 0 for k in self.ball_query_n_sample)
            return (steps_ok, m_ok, t)

        return max(fitting, key=score)

    def _vmem_limit(self, est):
        limit = max(32 << 20, est + (8 << 20))
        return min(limit, self.vmem_capacity - self._headroom())

    # ----------------------- fused Pallas kernel -----------------------------
    def _fused_call(self, B, S, C, Np, tS, vmem_limit):
        K_list = self.ball_query_n_sample
        padded_layers = self.padded_layers
        out_offsets = self.out_offsets
        OUTP = self.out_padded_total
        n_scales = len(K_list)

        def kernel(*refs):
            cent_ref, x_ref = refs[0], refs[1]
            out_ref = refs[-1]
            xpts = x_ref[0]                                   # (Np, C) f32 raw points
            cent = cent_ref[0]                                # (tS, C) f32 (xyz | zeros)
            pos = 2
            for si in range(n_scales):
                K = K_list[si]
                chans = padded_layers[si]
                idx = refs[pos][0]                            # (tS*K, 1) int32, -1 = pad
                pos += 1
                # In-kernel neighbourhood gather: one-hot rows x point cloud on the MXU.
                # Padded rows (idx == -1) give all-zero one-hot rows -> zero features.
                onehot = (idx == lax.broadcasted_iota(jnp.int32, (tS * K, Np), 1)
                          ).astype(jnp.float32)
                g = jnp.dot(onehot, xpts,
                            preferred_element_type=jnp.float32)       # (tS*K, C)
                valid = (idx >= 0).astype(jnp.float32)                # (tS*K, 1)
                g = g.reshape(tS, K, C)
                # Center xyz (cent is zero beyond column 3) and zero padded slots,
                # exactly matching the reference's group() semantics.
                g = (g - cent[:, None, :]) * valid.reshape(tS, K, 1)
                h = g.reshape(tS * K, C).astype(jnp.bfloat16)
                for li in range(len(chans) - 1):
                    w_ref, b_ref = refs[pos], refs[pos + 1]
                    pos += 2
                    h = jnp.dot(h, w_ref[...], preferred_element_type=jnp.float32)
                    h = jnp.maximum(h + b_ref[...], 0.0)      # bias + ReLU in f32
                    if li < len(chans) - 2:
                        h = h.astype(jnp.bfloat16)            # feed next matmul in bf16
                cpad = chans[-1]
                # TODO(synk): for very large K, turn this into a running max over K-chunks
                # (chunk the last matmul's M dim) to cut peak live VMEM on v7x.
                maxed = jnp.max(h.reshape(tS, K, cpad), axis=1)       # (tS, cpad)
                off = out_offsets[si]
                out_ref[0, :, off:off + cpad] = maxed         # lane-dense 128-aligned store

        def _const_spec(shape):
            # Constant-index blocks (weights / biases): single buffer saves VMEM.
            try:
                return pl.BlockSpec(shape, lambda b, s: (0, 0),
                                    pipeline_mode=pl.Buffered(1))
            except Exception:
                return pl.BlockSpec(shape, lambda b, s: (0, 0))

        in_specs = [
            pl.BlockSpec((1, tS, C), lambda b, s: (b, s, 0)),    # centroid (zero-padded to C)
            pl.BlockSpec((1, Np, C), lambda b, s: (b, 0, 0)),    # raw points (reused per batch)
        ]
        for si in range(n_scales):
            K = K_list[si]
            chans = padded_layers[si]
            in_specs.append(pl.BlockSpec((1, tS * K, 1), lambda b, s: (b, s, 0)))
            for li in range(len(chans) - 1):
                in_specs.append(_const_spec((chans[li], chans[li + 1])))
                in_specs.append(_const_spec((1, chans[li + 1])))

        return pl.pallas_call(
            kernel,
            out_shape=jax.ShapeDtypeStruct((B, S, OUTP), jnp.float32),
            grid=(B, S // tS),
            in_specs=in_specs,
            out_specs=pl.BlockSpec((1, tS, OUTP), lambda b, s: (b, s, 0)),
            compiler_params=pltpu.CompilerParams(
                dimension_semantics=("parallel", "parallel"),
                vmem_limit_bytes=vmem_limit),
        )

    # ----------------------- forward ----------------------------------------
    @functools.partial(jax.jit, static_argnums=0)
    def __call__(self, x, fps_key):
        # x: (B, N, C) channels-last, first 3 channels are xyz.
        B, N, C = x.shape
        S = self.n_out_point
        x = x.astype(jnp.float32)
        xyz = x[:, :, :3]

        cent_idx = farthest_point_sampling(xyz, S, fps_key)
        centroid = _batched_gather(xyz, cent_idx)                 # (B, S, 3) f32

        # Only ball-query INDICES leave XLA; the grouped (B,S*K,C) slab is built
        # inside the Pallas kernel (no HBM round trip of the largest tensor).
        idx_flat = []
        for K, radius in zip(self.ball_query_n_sample, self.ball_query_radius):
            idx = ball_query(centroid, xyz, K, radius)            # (B, S, K), -1 pads
            idx_flat.append(idx.reshape(B, S * K, 1))

        # Pad the point count to a sublane multiple (extra rows are never gathered).
        Np = _round_up(N, SUBLANE)
        x_pad = x if Np == N else jnp.concatenate(
            [x, jnp.zeros((B, Np - N, C), jnp.float32)], axis=1)

        # Centroid widened to the full feature width (zeros beyond xyz) so the
        # in-kernel centering subtract touches only the xyz columns.
        cent_wide = jnp.zeros((B, S, C), jnp.float32).at[:, :, :3].set(centroid)

        tS = self._select_tile(B, S, C, Np)
        vmem_limit = self._vmem_limit(self._vmem_estimate(tS, C, Np))
        fused = self._fused_call(B, S, C, Np, tS, vmem_limit)

        args = [cent_wide, x_pad]
        for si in range(len(self.ball_query_n_sample)):
            args.append(idx_flat[si])
            args.extend(self.params[si])
        raw = fused(*args)                                        # (B, S, sum(padded C_out))

        # Slice each scale's logical width out of its 128-aligned slot and prepend
        # the centroid -> (B, S, 3 + sum(C_out)), matching the PyTorch layout.
        parts = [centroid]
        for si, layers in enumerate(self.mlp_layers):
            off = self.out_offsets[si]
            parts.append(raw[..., off:off + layers[-1]])
        return jnp.concatenate(parts, axis=-1)


# ---------------------------------------------------------------------------
# Demo
# ---------------------------------------------------------------------------
if __name__ == "__main__":
    B, N, C = 2, 32, 6          # xyz + 3 extra features
    n_out_point = 8
    ball_query_n_sample = [8, 16]
    ball_query_radius = [0.4, 0.8]
    mlp_layers = [[C, 16, 32], [C, 16, 32]]

    root = jax.random.PRNGKey(0)
    k_x, k_params, k_fps = jax.random.split(root, 3)

    xyz = jax.random.uniform(k_x, (B, N, 3), jnp.float32)            # points in unit cube
    feats = jax.random.normal(jax.random.fold_in(k_x, 1), (B, N, C - 3), jnp.float32)
    x = jnp.concatenate([xyz, feats], axis=-1)                       # (B, N, C)

    module = SetAbstractionMSGPallas(n_out_point, ball_query_n_sample,
                                     ball_query_radius, mlp_layers, k_params)

    out = module(x, k_fps)
    out = jax.block_until_ready(out)

    expected = (B, n_out_point, 3 + sum(l[-1] for l in mlp_layers))
    assert out.shape == expected, (out.shape, expected)
    assert bool(jnp.all(jnp.isfinite(out)))
    print("KERNEL_OK")
</pallas_src>

<mosaic_0001>
module attributes {stable_mosaic.version = 11 : i64} {
  func.func @kernel(%arg0: i32, %arg1: i32, %arg2: memref<1x8x6xf32, #tpu.memory_space<vmem>>, %arg3: memref<1x32x6xf32, #tpu.memory_space<vmem>>, %arg4: memref<1x64x1xi32, #tpu.memory_space<vmem>>, %arg5: memref<6x128xbf16, #tpu.memory_space<vmem>>, %arg6: memref<1x128xf32, #tpu.memory_space<vmem>>, %arg7: memref<128x128xbf16, #tpu.memory_space<vmem>>, %arg8: memref<1x128xf32, #tpu.memory_space<vmem>>, %arg9: memref<1x128x1xi32, #tpu.memory_space<vmem>>, %arg10: memref<6x128xbf16, #tpu.memory_space<vmem>>, %arg11: memref<1x128xf32, #tpu.memory_space<vmem>>, %arg12: memref<128x128xbf16, #tpu.memory_space<vmem>>, %arg13: memref<1x128xf32, #tpu.memory_space<vmem>>, %arg14: memref<1x8x256xf32, #tpu.memory_space<vmem>>) attributes {dimension_semantics = [#tpu.dimension_semantics<parallel>, #tpu.dimension_semantics<parallel>], iteration_bounds = array<i64: 2, 1>, scalar_prefetch = 0 : i64, scratch_operands = 0 : i64, tpu.core_type = #tpu.core_type<tc>, window_params = [{transform_indices = @transform_0, window_bounds = array<i64: 1, 8, 6>}, {transform_indices = @transform_1, window_bounds = array<i64: 1, 32, 6>}, {transform_indices = @transform_2, window_bounds = array<i64: 1, 64, 1>}, {pipeline_mode = #tpu.pipeline_mode<synchronous>, transform_indices = @transform_3, window_bounds = array<i64: 6, 128>}, {pipeline_mode = #tpu.pipeline_mode<synchronous>, transform_indices = @transform_4, window_bounds = array<i64: 1, 128>}, {pipeline_mode = #tpu.pipeline_mode<synchronous>, transform_indices = @transform_5, window_bounds = array<i64: 128, 128>}, {pipeline_mode = #tpu.pipeline_mode<synchronous>, transform_indices = @transform_6, window_bounds = array<i64: 1, 128>}, {transform_indices = @transform_7, window_bounds = array<i64: 1, 128, 1>}, {pipeline_mode = #tpu.pipeline_mode<synchronous>, transform_indices = @transform_8, window_bounds = array<i64: 6, 128>}, {pipeline_mode = #tpu.pipeline_mode<synchronous>, transform_indices = @transform_9, window_bounds = array<i64: 1, 128>}, {pipeline_mode = #tpu.pipeline_mode<synchronous>, transform_indices = @transform_10, window_bounds = array<i64: 128, 128>}, {pipeline_mode = #tpu.pipeline_mode<synchronous>, transform_indices = @transform_11, window_bounds = array<i64: 1, 128>}, {transform_indices = @transform_12, window_bounds = array<i64: 1, 8, 256>}]} {
    %c0 = arith.constant 0 : index
    %c0_0 = arith.constant 0 : index
    %c0_1 = arith.constant 0 : index
    %0 = vector.load %arg3[%c0, %c0_0, %c0_1] : memref<1x32x6xf32, #tpu.memory_space<vmem>>, vector<1x32x6xf32>
    %1 = vector.shape_cast %0 : vector<1x32x6xf32> to vector<32x6xf32>
    %c0_2 = arith.constant 0 : index
    %c0_3 = arith.constant 0 : index
    %c0_4 = arith.constant 0 : index
    %2 = vector.load %arg2[%c0_2, %c0_3, %c0_4] : memref<1x8x6xf32, #tpu.memory_space<vmem>>, vector<1x8x6xf32>
    %3 = vector.shape_cast %2 : vector<1x8x6xf32> to vector<8x6xf32>
    %c0_5 = arith.constant 0 : index
    %c0_6 = arith.constant 0 : index
    %c0_7 = arith.constant 0 : index
    %4 = vector.load %arg4[%c0_5, %c0_6, %c0_7] : memref<1x64x1xi32, #tpu.memory_space<vmem>>, vector<1x64x1xi32>
    %5 = vector.shape_cast %4 : vector<1x64x1xi32> to vector<64x1xi32>
    %6 = tpu.iota {dimensions = array<i32: 1>} : vector<64x32xi32>
    %7 = vector.broadcast %5 : vector<64x1xi32> to vector<64x32xi32>
    %8 = arith.cmpi eq, %7, %6 : vector<64x32xi32>
    %9 = arith.extui %8 : vector<64x32xi1> to vector<64x32xi32>
    %10 = arith.sitofp %9 : vector<64x32xi32> to vector<64x32xf32>
    %cst = arith.constant dense<0.000000e+00> : vector<64x6xf32>
    %11 = tpu.matmul %10, %1, %cst {dimension_numbers = #tpu.dot_dimension_numbers<[1], [0], [0], [1], [0, 0, 1, 1], [], []>} : vector<64x32xf32>, vector<32x6xf32>, vector<64x6xf32> -> vector<64x6xf32>
    %c0_i32 = arith.constant 0 : i32
    %12 = vector.broadcast %c0_i32 : i32 to vector<64x1xi32>
    %13 = arith.cmpi sge, %5, %12 : vector<64x1xi32>
    %14 = arith.extui %13 : vector<64x1xi1> to vector<64x1xi32>
    %15 = arith.sitofp %14 : vector<64x1xi32> to vector<64x1xf32>
    %16 = vector.shape_cast %11 : vector<64x6xf32> to vector<8x8x6xf32>
    %17 = vector.shape_cast %3 : vector<8x6xf32> to vector<8x1x6xf32>
    %18 = vector.broadcast %17 : vector<8x1x6xf32> to vector<8x8x6xf32>
    %19 = arith.subf %16, %18 : vector<8x8x6xf32>
    %20 = vector.shape_cast %15 : vector<64x1xf32> to vector<8x8x1xf32>
    %21 = vector.broadcast %20 : vector<8x8x1xf32> to vector<8x8x6xf32>
    %22 = arith.mulf %19, %21 : vector<8x8x6xf32>
    %23 = vector.shape_cast %22 : vector<8x8x6xf32> to vector<64x6xf32>
    %24 = arith.truncf %23 : vector<64x6xf32> to vector<64x6xbf16>
    %c0_8 = arith.constant 0 : index
    %c0_9 = arith.constant 0 : index
    %25 = vector.load %arg5[%c0_8, %c0_9] : memref<6x128xbf16, #tpu.memory_space<vmem>>, vector<6x128xbf16>
    %cst_10 = arith.constant dense<0.000000e+00> : vector<64x128xf32>
    %26 = tpu.matmul %24, %25, %cst_10 {dimension_numbers = #tpu.dot_dimension_numbers<[1], [0], [0], [1], [0, 0, 1, 1], [], []>} : vector<64x6xbf16>, vector<6x128xbf16>, vector<64x128xf32> -> vector<64x128xf32>
    %c0_11 = arith.constant 0 : index
    %c0_12 = arith.constant 0 : index
    %27 = vector.load %arg6[%c0_11, %c0_12] : memref<1x128xf32, #tpu.memory_space<vmem>>, vector<1x128xf32>
    %28 = vector.broadcast %27 : vector<1x128xf32> to vector<64x128xf32>
    %29 = arith.addf %26, %28 : vector<64x128xf32>
    %cst_13 = arith.constant 0.000000e+00 : f32
    %30 = vector.broadcast %cst_13 : f32 to vector<64x128xf32>
    %31 = arith.maximumf %29, %30 : vector<64x128xf32>
    %32 = arith.truncf %31 : vector<64x128xf32> to vector<64x128xbf16>
    %c0_14 = arith.constant 0 : index
    %c0_15 = arith.constant 0 : index
    %33 = vector.load %arg7[%c0_14, %c0_15] : memref<128x128xbf16, #tpu.memory_space<vmem>>, vector<128x128xbf16>
    %cst_16 = arith.constant dense<0.000000e+00> : vector<64x128xf32>
    %34 = tpu.matmul %32, %33, %cst_16 {dimension_numbers = #tpu.dot_dimension_numbers<[1], [0], [0], [1], [0, 0, 1, 1], [], []>} : vector<64x128xbf16>, vector<128x128xbf16>, vector<64x128xf32> -> vector<64x128xf32>
    %c0_17 = arith.constant 0 : index
    %c0_18 = arith.constant 0 : index
    %35 = vector.load %arg8[%c0_17, %c0_18] : memref<1x128xf32, #tpu.memory_space<vmem>>, vector<1x128xf32>
    %36 = vector.broadcast %35 : vector<1x128xf32> to vector<64x128xf32>
    %37 = arith.addf %34, %36 : vector<64x128xf32>
    %cst_19 = arith.constant 0.000000e+00 : f32
    %38 = vector.broadcast %cst_19 : f32 to vector<64x128xf32>
    %39 = arith.maximumf %37, %38 : vector<64x128xf32>
    %40 = vector.shape_cast %39 : vector<64x128xf32> to vector<8x8x128xf32>
    %cst_20 = arith.constant dense<0xFF800000> : vector<8x128xf32>
    %41 = vector.multi_reduction <maximumf>, %40, %cst_20 [1] : vector<8x8x128xf32> to vector<8x128xf32>
    %c0_21 = arith.constant 0 : index
    %c0_22 = arith.constant 0 : index
    %c0_23 = arith.constant 0 : index
    %42 = vector.load %arg14[%c0_21, %c0_22, %c0_23] : memref<1x8x256xf32, #tpu.memory_space<vmem>>, vector<1x8x128xf32>
    %43 = vector.shape_cast %42 : vector<1x8x128xf32> to vector<8x128xf32>
    %44 = vector.shape_cast %41 : vector<8x128xf32> to vector<1x8x128xf32>
    tpu.vector_store %arg14[%c0_21, %c0_22, %c0_23], %44 {strides = array<i32>} : memref<1x8x256xf32, #tpu.memory_space<vmem>>, vector<1x8x128xf32>,
    %c0_24 = arith.constant 0 : index
    %c0_25 = arith.constant 0 : index
    %c0_26 = arith.constant 0 : index
    %45 = vector.load %arg9[%c0_24, %c0_25, %c0_26] : memref<1x128x1xi32, #tpu.memory_space<vmem>>, vector<1x128x1xi32>
    %46 = vector.shape_cast %45 : vector<1x128x1xi32> to vector<128x1xi32>
    %47 = tpu.iota {dimensions = array<i32: 1>} : vector<128x32xi32>
    %48 = vector.broadcast %46 : vector<128x1xi32> to vector<128x32xi32>
    %49 = arith.cmpi eq, %48, %47 : vector<128x32xi32>
    %50 = arith.extui %49 : vector<128x32xi1> to vector<128x32xi32>
    %51 = arith.sitofp %50 : vector<128x32xi32> to vector<128x32xf32>
    %cst_27 = arith.constant dense<0.000000e+00> : vector<128x6xf32>
    %52 = tpu.matmul %51, %1, %cst_27 {dimension_numbers = #tpu.dot_dimension_numbers<[1], [0], [0], [1], [0, 0, 1, 1], [], []>} : vector<128x32xf32>, vector<32x6xf32>, vector<128x6xf32> -> vector<128x6xf32>
    %c0_i32_28 = arith.constant 0 : i32
    %53 = vector.broadcast %c0_i32_28 : i32 to vector<128x1xi32>
    %54 = arith.cmpi sge, %46, %53 : vector<128x1xi32>
    %55 = arith.extui %54 : vector<128x1xi1> to vector<128x1xi32>
    %56 = arith.sitofp %55 : vector<128x1xi32> to vector<128x1xf32>
    %57 = vector.shape_cast %52 : vector<128x6xf32> to vector<8x16x6xf32>
    %58 = vector.shape_cast %3 : vector<8x6xf32> to vector<8x1x6xf32>
    %59 = vector.broadcast %58 : vector<8x1x6xf32> to vector<8x16x6xf32>
    %60 = arith.subf %57, %59 : vector<8x16x6xf32>
    %61 = vector.shape_cast %56 : vector<128x1xf32> to vector<8x16x1xf32>
    %62 = vector.broadcast %61 : vector<8x16x1xf32> to vector<8x16x6xf32>
    %63 = arith.mulf %60, %62 : vector<8x16x6xf32>
    %64 = vector.shape_cast %63 : vector<8x16x6xf32> to vector<128x6xf32>
    %65 = arith.truncf %64 : vector<128x6xf32> to vector<128x6xbf16>
    %c0_29 = arith.constant 0 : index
    %c0_30 = arith.constant 0 : index
    %66 = vector.load %arg10[%c0_29, %c0_30] : memref<6x128xbf16, #tpu.memory_space<vmem>>, vector<6x128xbf16>
    %cst_31 = arith.constant dense<0.000000e+00> : vector<128x128xf32>
    %67 = tpu.matmul %65, %66, %cst_31 {dimension_numbers = #tpu.dot_dimension_numbers<[1], [0], [0], [1], [0, 0, 1, 1], [], []>} : vector<128x6xbf16>, vector<6x128xbf16>, vector<128x128xf32> -> vector<128x128xf32>
    %c0_32 = arith.constant 0 : index
    %c0_33 = arith.constant 0 : index
    %68 = vector.load %arg11[%c0_32, %c0_33] : memref<1x128xf32, #tpu.memory_space<vmem>>, vector<1x128xf32>
    %69 = vector.broadcast %68 : vector<1x128xf32> to vector<128x128xf32>
    %70 = arith.addf %67, %69 : vector<128x128xf32>
    %cst_34 = arith.constant 0.000000e+00 : f32
    %71 = vector.broadcast %cst_34 : f32 to vector<128x128xf32>
    %72 = arith.maximumf %70, %71 : vector<128x128xf32>
    %73 = arith.truncf %72 : vector<128x128xf32> to vector<128x128xbf16>
    %c0_35 = arith.constant 0 : index
    %c0_36 = arith.constant 0 : index
    %74 = vector.load %arg12[%c0_35, %c0_36] : memref<128x128xbf16, #tpu.memory_space<vmem>>, vector<128x128xbf16>
    %cst_37 = arith.constant dense<0.000000e+00> : vector<128x128xf32>
    %75 = tpu.matmul %73, %74, %cst_37 {dimension_numbers = #tpu.dot_dimension_numbers<[1], [0], [0], [1], [0, 0, 1, 1], [], []>} : vector<128x128xbf16>, vector<128x128xbf16>, vector<128x128xf32> -> vector<128x128xf32>
    %c0_38 = arith.constant 0 : index
    %c0_39 = arith.constant 0 : index
    %76 = vector.load %arg13[%c0_38, %c0_39] : memref<1x128xf32, #tpu.memory_space<vmem>>, vector<1x128xf32>
    %77 = vector.broadcast %76 : vector<1x128xf32> to vector<128x128xf32>
    %78 = arith.addf %75, %77 : vector<128x128xf32>
    %cst_40 = arith.constant 0.000000e+00 : f32
    %79 = vector.broadcast %cst_40 : f32 to vector<128x128xf32>
    %80 = arith.maximumf %78, %79 : vector<128x128xf32>
    %81 = vector.shape_cast %80 : vector<128x128xf32> to vector<8x16x128xf32>
    %cst_41 = arith.constant dense<0xFF800000> : vector<8x128xf32>
    %82 = vector.multi_reduction <maximumf>, %81, %cst_41 [1] : vector<8x16x128xf32> to vector<8x128xf32>
    %c0_42 = arith.constant 0 : index
    %c0_43 = arith.constant 0 : index
    %c128 = arith.constant 128 : index
    %83 = vector.load %arg14[%c0_42, %c0_43, %c128] : memref<1x8x256xf32, #tpu.memory_space<vmem>>, vector<1x8x128xf32>
    %84 = vector.shape_cast %83 : vector<1x8x128xf32> to vector<8x128xf32>
    %85 = vector.shape_cast %82 : vector<8x128xf32> to vector<1x8x128xf32>
    tpu.vector_store %arg14[%c0_42, %c0_43, %c128], %85 {strides = array<i32>} : memref<1x8x256xf32, #tpu.memory_space<vmem>>, vector<1x8x128xf32>,
    return
  }
  func.func @transform_0(%arg0: i32, %arg1: i32) -> (i32, i32, i32) {
    %c0_i32 = arith.constant 0 : i32
    %c0_i32_0 = arith.constant 0 : i32
    return %arg0, %arg1, %c0_i32 : i32, i32, i32
  }
  func.func @transform_1(%arg0: i32, %arg1: i32) -> (i32, i32, i32) {
    %c0_i32 = arith.constant 0 : i32
    %c0_i32_0 = arith.constant 0 : i32
    %c0_i32_1 = arith.constant 0 : i32
    return %arg0, %c0_i32, %c0_i32_0 : i32, i32, i32
  }
  func.func @transform_2(%arg0: i32, %arg1: i32) -> (i32, i32, i32) {
    %c0_i32 = arith.constant 0 : i32
    %c0_i32_0 = arith.constant 0 : i32
    return %arg0, %arg1, %c0_i32 : i32, i32, i32
  }
  func.func @transform_3(%arg0: i32, %arg1: i32) -> (i32, i32) {
    %c0_i32 = arith.constant 0 : i32
    %c0_i32_0 = arith.constant 0 : i32
    %c0_i32_1 = arith.constant 0 : i32
    return %c0_i32, %c0_i32_0 : i32, i32
  }
  func.func @transform_4(%arg0: i32, %arg1: i32) -> (i32, i32) {
    %c0_i32 = arith.constant 0 : i32
    %c0_i32_0 = arith.constant 0 : i32
    %c0_i32_1 = arith.constant 0 : i32
    return %c0_i32, %c0_i32_0 : i32, i32
  }
  func.func @transform_5(%arg0: i32, %arg1: i32) -> (i32, i32) {
    %c0_i32 = arith.constant 0 : i32
    %c0_i32_0 = arith.constant 0 : i32
    %c0_i32_1 = arith.constant 0 : i32
    return %c0_i32, %c0_i32_0 : i32, i32
  }
  func.func @transform_6(%arg0: i32, %arg1: i32) -> (i32, i32) {
    %c0_i32 = arith.constant 0 : i32
    %c0_i32_0 = arith.constant 0 : i32
    %c0_i32_1 = arith.constant 0 : i32
    return %c0_i32, %c0_i32_0 : i32, i32
  }
  func.func @transform_7(%arg0: i32, %arg1: i32) -> (i32, i32, i32) {
    %c0_i32 = arith.constant 0 : i32
    %c0_i32_0 = arith.constant 0 : i32
    return %arg0, %arg1, %c0_i32 : i32, i32, i32
  }
  func.func @transform_8(%arg0: i32, %arg1: i32) -> (i32, i32) {
    %c0_i32 = arith.constant 0 : i32
    %c0_i32_0 = arith.constant 0 : i32
    %c0_i32_1 = arith.constant 0 : i32
    return %c0_i32, %c0_i32_0 : i32, i32
  }
  func.func @transform_9(%arg0: i32, %arg1: i32) -> (i32, i32) {
    %c0_i32 = arith.constant 0 : i32
    %c0_i32_0 = arith.constant 0 : i32
    %c0_i32_1 = arith.constant 0 : i32
    return %c0_i32, %c0_i32_0 : i32, i32
  }
  func.func @transform_10(%arg0: i32, %arg1: i32) -> (i32, i32) {
    %c0_i32 = arith.constant 0 : i32
    %c0_i32_0 = arith.constant 0 : i32
    %c0_i32_1 = arith.constant 0 : i32
    return %c0_i32, %c0_i32_0 : i32, i32
  }
  func.func @transform_11(%arg0: i32, %arg1: i32) -> (i32, i32) {
    %c0_i32 = arith.constant 0 : i32
    %c0_i32_0 = arith.constant 0 : i32
    %c0_i32_1 = arith.constant 0 : i32
    return %c0_i32, %c0_i32_0 : i32, i32
  }
  func.func @transform_12(%arg0: i32, %arg1: i32) -> (i32, i32, i32) {
    %c0_i32 = arith.constant 0 : i32
    %c0_i32_0 = arith.constant 0 : i32
    return %arg0, %arg1, %c0_i32 : i32, i32, i32
  }
}

</mosaic_0001>

<llo_original>
// kernel: custom-call.4
$region0: #{custom-call.4}
  %s0 = inlined_call_operand.vmem [shape: f32[2,32], index: 0, kind: output, shape index: {}]

// kernel: a_call__.1
$region0: #{a_call__.1}
  #allocation0 [shape = 'u32[]', space=smem, size = 0x4, offset = 0x4, fixed_abs, tag = 'smem constant byte address 0x4 - core index']
  #allocation1 [shape = 'u32[72,128]{1,0:T(1,128)}', space=vmem, size = 0x9000, scoped, tag = 'internal scratch']
  %s0 = inlined_call_operand.vmem [shape: f32[2,8,6], index: 0, kind: input, shape index: {}]
  %s1 = inlined_call_operand.vmem [shape: f32[2,32,6], index: 1, kind: input, shape index: {}]
  %s2 = inlined_call_operand.vmem [shape: s32[2,64,1], index: 2, kind: input, shape index: {}]
  %s3 = inlined_call_operand.vmem [shape: bf16[6,128], index: 3, kind: input, shape index: {}]
  %s4 = inlined_call_operand.vmem [shape: f32[1,128], index: 4, kind: input, shape index: {}]
  %s5 = inlined_call_operand.vmem [shape: bf16[128,128], index: 5, kind: input, shape index: {}]
  %s6 = inlined_call_operand.vmem [shape: f32[1,128], index: 6, kind: input, shape index: {}]
  %s7 = inlined_call_operand.vmem [shape: s32[2,128,1], index: 7, kind: input, shape index: {}]
  %s8 = inlined_call_operand.vmem [shape: bf16[6,128], index: 8, kind: input, shape index: {}]
  %s9 = inlined_call_operand.vmem [shape: f32[1,128], index: 9, kind: input, shape index: {}]
  %s10 = inlined_call_operand.vmem [shape: bf16[128,128], index: 10, kind: input, shape index: {}]
  %s11 = inlined_call_operand.vmem [shape: f32[1,128], index: 11, kind: input, shape index: {}]
  %s12 = inlined_call_operand.vmem [shape: f32[2,8,256], index: 12, kind: output, shape index: {}]
  %s13 = sld [smem:[#allocation0]]
  $region81: #{a_call__.1} parent=0
    _
  %s15 = ssub.s32 1, %s13
  %s16 = scalar_select 0, %s15, %s13
  loop: start=0, step=1, limit=4
  $region2: #{a_call__.1} parent=0 // loop_pre_header
    _
  $region3: #{a_call__.1} parent=0 // loop_header
    %s18 = sphi 0, %s22
    %p19 = scmp.ge.s32.totalorder %s18, 4
    %s25 = sphi 0, %s37
    %s26 = sphi 0, %s33
    %s27 = sphi 0, %s25
    %s28 = sphi 0, %s26
    %s29 = sphi 0, %s27
    %s30 = sphi 0, %s28
    %s42 = sphi 0, %s44
    %s45 = sphi 0, %s42
    %s46 = sphi 0, %s45
    %s62 = sphi 0, %s46
    %s68 = sphi 0, %s70
    %s71 = sphi 0, %s68
    %s72 = sphi 0, %s71
    %s88 = sphi 0, %s72
    %s96 = sphi 0, %s98
    %s99 = sphi 0, %s96
    %s100 = sphi 0, %s99
    %s116 = sphi 0, %s100
    %s120 = sphi 0, %s120
    %s122 = sphi 0, %s120
    %s123 = sphi 0, %s122
    %s137 = sphi 0, %s123
    %s141 = sphi 0, %s141
    %s143 = sphi 0, %s141
    %s144 = sphi 0, %s143
    %s158 = sphi 0, %s144
    %s162 = sphi 0, %s162
    %s164 = sphi 0, %s162
    %s165 = sphi 0, %s164
    %s179 = sphi 0, %s165
    %s183 = sphi 0, %s183
    %s185 = sphi 0, %s183
    %s186 = sphi 0, %s185
    %s200 = sphi 0, %s186
    %s208 = sphi 0, %s210
    %s211 = sphi 0, %s208
    %s212 = sphi 0, %s211
    %s228 = sphi 0, %s212
    %s232 = sphi 0, %s232
    %s234 = sphi 0, %s232
    %s235 = sphi 0, %s234
    %s249 = sphi 0, %s235
    %s253 = sphi 0, %s253
    %s255 = sphi 0, %s253
    %s256 = sphi 0, %s255
    %s270 = sphi 0, %s256
    %s274 = sphi 0, %s274
    %s276 = sphi 0, %s274
    %s277 = sphi 0, %s276
    %s291 = sphi 0, %s277
    %s295 = sphi 0, %s295
    %s297 = sphi 0, %s295
    %s298 = sphi 0, %s297
    %s312 = sphi 0, %s298
    %s320 = sphi 0, %s322
    %s323 = sphi 0, %s320
    %s324 = sphi 0, %s323
    %s340 = sphi 0, %s324
  $region4: #{a_call__.1} parent=0 // loop_header_branch
    %21 = sbr.rel (%p19) target = $region8
  $region5: #{a_call__.1} parent=0 // loop_body
    %s23 = ssub.s32 %s18, 1
    %s24 = ssub.s32 %s18, 2
    %s31 = sadd.s32 1, %s26
    %p32 = scmp.ge.s32.totalorder %s31, 1
    %s33 = scalar_select %p32, 0, %s31
    %s34 = sadd.s32 1, %s25
    %s35 = scalar_select %p32, %s34, %s25
    %p36 = scmp.ge.s32.totalorder %s35, 2
    %s37 = scalar_select %p36, 0, %s35
    %s38 = ssub.s32 %s25, %s37
    %s39 = ssub.s32 %s26, %s33
    %s40 = sor.u32 %s38, %s39
    %p41 = scmp.eq.s32.totalorder %s40, 0
    %s43 = sadd.s32 %s42, 1
    %s44 = scalar_select %p41, %s42, %s43
    %p47 = pneg %p41
    %p48 = scmp.eq.s32.totalorder %s18, 1
    %p49 = por %p47, %p48
    %p50 = scmp.ne.s32.totalorder %s42, %s45
    %p51 = scmp.eq.s32.totalorder %s18, 0
    %p52 = por %p50, %p51
    %p53 = scmp.ne.s32.totalorder %s42, %s45
    %p54 = scmp.eq.s32.totalorder %s23, 1
    %p55 = por %p53, %p54
    %p56 = scmp.ne.s32.totalorder %s45, %s46
    %p57 = scmp.eq.s32.totalorder %s23, 0
    %p58 = por %p56, %p57
    %p59 = scmp.ne.s32.totalorder %s45, %s46
    %p60 = scmp.eq.s32.totalorder %s24, 1
    %p61 = por %p59, %p60
    %p63 = scmp.ne.s32.totalorder %s46, %s62
    %p64 = scmp.eq.s32.totalorder %s24, 0
    %p65 = por %p63, %p64
    %s66 = ssub.s32 %s25, %s37
    %p67 = scmp.eq.s32.totalorder %s66, 0
    %s69 = sadd.s32 %s68, 1
    %s70 = scalar_select %p67, %s68, %s69
    %p73 = pneg %p67
    %p74 = scmp.eq.s32.totalorder %s18, 1
    %p75 = por %p73, %p74
    %p76 = scmp.ne.s32.totalorder %s68, %s71
    %p77 = scmp.eq.s32.totalorder %s18, 0
    %p78 = por %p76, %p77
    %p79 = scmp.ne.s32.totalorder %s68, %s71
    %p80 = scmp.eq.s32.totalorder %s23, 1
    %p81 = por %p79, %p80
    %p82 = scmp.ne.s32.totalorder %s71, %s72
    %p83 = scmp.eq.s32.totalorder %s23, 0
    %p84 = por %p82, %p83
    %p85 = scmp.ne.s32.totalorder %s71, %s72
    %p86 = scmp.eq.s32.totalorder %s24, 1
    %p87 = por %p85, %p86
    %p89 = scmp.ne.s32.totalorder %s72, %s88
    %p90 = scmp.eq.s32.totalorder %s24, 0
    %p91 = por %p89, %p90
    %s92 = ssub.s32 %s25, %s37
    %s93 = ssub.s32 %s26, %s33
    %s94 = sor.u32 %s92, %s93
    %p95 = scmp.eq.s32.totalorder %s94, 0
    %s97 = sadd.s32 %s96, 1
    %s98 = scalar_select %p95, %s96, %s97
    %p101 = pneg %p95
    %p102 = scmp.eq.s32.totalorder %s18, 1
    %p103 = por %p101, %p102
    %p104 = scmp.ne.s32.totalorder %s96, %s99
    %p105 = scmp.eq.s32.totalorder %s18, 0
    %p106 = por %p104, %p105
    %p107 = scmp.ne.s32.totalorder %s96, %s99
    %p108 = scmp.eq.s32.totalorder %s23, 1
    %p109 = por %p107, %p108
    %p110 = scmp.ne.s32.totalorder %s99, %s100
    %p111 = scmp.eq.s32.totalorder %s23, 0
    %p112 = por %p110, %p111
    %p113 = scmp.ne.s32.totalorder %s99, %s100
    %p114 = scmp.eq.s32.totalorder %s24, 1
    %p115 = por %p113, %p114
    %p117 = scmp.ne.s32.totalorder %s100, %s116
    %p118 = scmp.eq.s32.totalorder %s24, 0
    %p119 = por %p117, %p118
    %s121 = sadd.s32 %s120, 1
    %p124 = scmp.eq.s32.totalorder %s18, 1
    %p125 = scmp.ne.s32.totalorder %s120, %s122
    %p126 = scmp.eq.s32.totalorder %s18, 0
    %p127 = por %p125, %p126
    %p128 = scmp.ne.s32.totalorder %s120, %s122
    %p129 = scmp.eq.s32.totalorder %s23, 1
    %p130 = por %p128, %p129
    %p131 = scmp.ne.s32.totalorder %s122, %s123
    %p132 = scmp.eq.s32.totalorder %s23, 0
    %p133 = por %p131, %p132
    %p134 = scmp.ne.s32.totalorder %s122, %s123
    %p135 = scmp.eq.s32.totalorder %s24, 1
    %p136 = por %p134, %p135
    %p138 = scmp.ne.s32.totalorder %s123, %s137
    %p139 = scmp.eq.s32.totalorder %s24, 0
    %p140 = por %p138, %p139
    %s142 = sadd.s32 %s141, 1
    %p145 = scmp.eq.s32.totalorder %s18, 1
    %p146 = scmp.ne.s32.totalorder %s141, %s143
    %p147 = scmp.eq.s32.totalorder %s18, 0
    %p148 = por %p146, %p147
    %p149 = scmp.ne.s32.totalorder %s141, %s143
    %p150 = scmp.eq.s32.totalorder %s23, 1
    %p151 = por %p149, %p150
    %p152 = scmp.ne.s32.totalorder %s143, %s144
    %p153 = scmp.eq.s32.totalorder %s23, 0
    %p154 = por %p152, %p153
    %p155 = scmp.ne.s32.totalorder %s143, %s144
    %p156 = scmp.eq.s32.totalorder %s24, 1
    %p157 = por %p155, %p156
    %p159 = scmp.ne.s32.totalorder %s144, %s158
    %p160 = scmp.eq.s32.totalorder %s24, 0
    %p161 = por %p159, %p160
    %s163 = sadd.s32 %s162, 1
    %p166 = scmp.eq.s32.totalorder %s18, 1
    %p167 = scmp.ne.s32.totalorder %s162, %s164
    %p168 = scmp.eq.s32.totalorder %s18, 0
    %p169 = por %p167, %p168
    %p170 = scmp.ne.s32.totalorder %s162, %s164
    %p171 = scmp.eq.s32.totalorder %s23, 1
    %p172 = por %p170, %p171
    %p173 = scmp.ne.s32.totalorder %s164, %s165
    %p174 = scmp.eq.s32.totalorder %s23, 0
    %p175 = por %p173, %p174
    %p176 = scmp.ne.s32.totalorder %s164, %s165
    %p177 = scmp.eq.s32.totalorder %s24, 1
    %p178 = por %p176, %p177
    %p180 = scmp.ne.s32.totalorder %s165, %s179
    %p181 = scmp.eq.s32.totalorder %s24, 0
    %p182 = por %p180, %p181
    %s184 = sadd.s32 %s183, 1
    %p187 = scmp.eq.s32.totalorder %s18, 1
    %p188 = scmp.ne.s32.totalorder %s183, %s185
    %p189 = scmp.eq.s32.totalorder %s18, 0
    %p190 = por %p188, %p189
    %p191 = scmp.ne.s32.totalorder %s183, %s185
    %p192 = scmp.eq.s32.totalorder %s23, 1
    %p193 = por %p191, %p192
    %p194 = scmp.ne.s32.totalorder %s185, %s186
    %p195 = scmp.eq.s32.totalorder %s23, 0
    %p196 = por %p194, %p195
    %p197 = scmp.ne.s32.totalorder %s185, %s186
    %p198 = scmp.eq.s32.totalorder %s24, 1
    %p199 = por %p197, %p198
    %p201 = scmp.ne.s32.totalorder %s186, %s200
    %p202 = scmp.eq.s32.totalorder %s24, 0
    %p203 = por %p201, %p202
    %s204 = ssub.s32 %s25, %s37
    %s205 = ssub.s32 %s26, %s33
    %s206 = sor.u32 %s204, %s205
    %p207 = scmp.eq.s32.totalorder %s206, 0
    %s209 = sadd.s32 %s208, 1
    %s210 = scalar_select %p207, %s208, %s209
    %p213 = pneg %p207
    %p214 = scmp.eq.s32.totalorder %s18, 1
    %p215 = por %p213, %p214
    %p216 = scmp.ne.s32.totalorder %s208, %s211
    %p217 = scmp.eq.s32.totalorder %s18, 0
    %p218 = por %p216, %p217
    %p219 = scmp.ne.s32.totalorder %s208, %s211
    %p220 = scmp.eq.s32.totalorder %s23, 1
    %p221 = por %p219, %p220
    %p222 = scmp.ne.s32.totalorder %s211, %s212
    %p223 = scmp.eq.s32.totalorder %s23, 0
    %p224 = por %p222, %p223
    %p225 = scmp.ne.s32.totalorder %s211, %s212
    %p226 = scmp.eq.s32.totalorder %s24, 1
    %p227 = por %p225, %p226
    %p229 = scmp.ne.s32.totalorder %s212, %s228
    %p230 = scmp.eq.s32.totalorder %s24, 0
    %p231 = por %p229, %p230
    %s233 = sadd.s32 %s232, 1
    %p236 = scmp.eq.s32.totalorder %s18, 1
    %p237 = scmp.ne.s32.totalorder %s232, %s234
    %p238 = scmp.eq.s32.totalorder %s18, 0
    %p239 = por %p237, %p238
    %p240 = scmp.ne.s32.totalorder %s232, %s234
    %p241 = scmp.eq.s32.totalorder %s23, 1
    %p242 = por %p240, %p241
    %p243 = scmp.ne.s32.totalorder %s234, %s235
    %p244 = scmp.eq.s32.totalorder %s23, 0
    %p245 = por %p243, %p244
    %p246 = scmp.ne.s32.totalorder %s234, %s235
    %p247 = scmp.eq.s32.totalorder %s24, 1
    %p248 = por %p246, %p247
    %p250 = scmp.ne.s32.totalorder %s235, %s249
    %p251 = scmp.eq.s32.totalorder %s24, 0
    %p252 = por %p250, %p251
    %s254 = sadd.s32 %s253, 1
    %p257 = scmp.eq.s32.totalorder %s18, 1
    %p258 = scmp.ne.s32.totalorder %s253, %s255
    %p259 = scmp.eq.s32.totalorder %s18, 0
    %p260 = por %p258, %p259
    %p261 = scmp.ne.s32.totalorder %s253, %s255
    %p262 = scmp.eq.s32.totalorder %s23, 1
    %p263 = por %p261, %p262
    %p264 = scmp.ne.s32.totalorder %s255, %s256
    %p265 = scmp.eq.s32.totalorder %s23, 0
    %p266 = por %p264, %p265
    %p267 = scmp.ne.s32.totalorder %s255, %s256
    %p268 = scmp.eq.s32.totalorder %s24, 1
    %p269 = por %p267, %p268
    %p271 = scmp.ne.s32.totalorder %s256, %s270
    %p272 = scmp.eq.s32.totalorder %s24, 0
    %p273 = por %p271, %p272
    %s275 = sadd.s32 %s274, 1
    %p278 = scmp.eq.s32.totalorder %s18, 1
    %p279 = scmp.ne.s32.totalorder %s274, %s276
    %p280 = scmp.eq.s32.totalorder %s18, 0
    %p281 = por %p279, %p280
    %p282 = scmp.ne.s32.totalorder %s274, %s276
    %p283 = scmp.eq.s32.totalorder %s23, 1
    %p284 = por %p282, %p283
    %p285 = scmp.ne.s32.totalorder %s276, %s277
    %p286 = scmp.eq.s32.totalorder %s23, 0
    %p287 = por %p285, %p286
    %p288 = scmp.ne.s32.totalorder %s276, %s277
    %p289 = scmp.eq.s32.totalorder %s24, 1
    %p290 = por %p288, %p289
    %p292 = scmp.ne.s32.totalorder %s277, %s291
    %p293 = scmp.eq.s32.totalorder %s24, 0
    %p294 = por %p292, %p293
    %s296 = sadd.s32 %s295, 1
    %p299 = scmp.eq.s32.totalorder %s18, 1
    %p300 = scmp.ne.s32.totalorder %s295, %s297
    %p301 = scmp.eq.s32.totalorder %s18, 0
    %p302 = por %p300, %p301
    %p303 = scmp.ne.s32.totalorder %s295, %s297
    %p304 = scmp.eq.s32.totalorder %s23, 1
    %p305 = por %p303, %p304
    %p306 = scmp.ne.s32.totalorder %s297, %s298
    %p307 = scmp.eq.s32.totalorder %s23, 0
    %p308 = por %p306, %p307
    %p309 = scmp.ne.s32.totalorder %s297, %s298
    %p310 = scmp.eq.s32.totalorder %s24, 1
    %p311 = por %p309, %p310
    %p313 = scmp.ne.s32.totalorder %s298, %s312
    %p314 = scmp.eq.s32.totalorder %s24, 0
    %p315 = por %p313, %p314
    %s316 = ssub.s32 %s25, %s37
    %s317 = ssub.s32 %s26, %s33
    %s318 = sor.u32 %s316, %s317
    %p319 = scmp.eq.s32.totalorder %s318, 0
    %s321 = sadd.s32 %s320, 1
    %s322 = scalar_select %p319, %s320, %s321
    %p325 = pneg %p319
    %p326 = scmp.eq.s32.totalorder %s18, 1
    %p327 = por %p325, %p326
    %p328 = scmp.ne.s32.totalorder %s320, %s323
    %p329 = scmp.eq.s32.totalorder %s18, 0
    %p330 = por %p328, %p329
    %p331 = scmp.ne.s32.totalorder %s320, %s323
    %p332 = scmp.eq.s32.totalorder %s23, 1
    %p333 = por %p331, %p332
    %p334 = scmp.ne.s32.totalorder %s323, %s324
    %p335 = scmp.eq.s32.totalorder %s23, 0
    %p336 = por %p334, %p335
    %p337 = scmp.ne.s32.totalorder %s323, %s324
    %p338 = scmp.eq.s32.totalorder %s24, 1
    %p339 = por %p337, %p338
    %p341 = scmp.ne.s32.totalorder %s324, %s340
    %p342 = scmp.eq.s32.totalorder %s24, 0
    %p343 = por %p341, %p342
    %p344 = scmp.le.s32.totalorder 1, %s18
    %p345 = scmp.lt.s32.totalorder %s18, 3
    %p346 = pnand %p344, %p345
    %p347 = pneg %p346
    // Predicated region
    $region9: #{a_call__.1} parent=5 // pred_check
      _
    $region10: #{a_call__.1} parent=5 // pred_check_branch
      %349 = sbr.rel (%p346) target = $region12
    $region11: #{a_call__.1} parent=5 // pred_region
      %s350 = ssub.s32 %s18, 1
      // Predicated region
      $region13: #{a_call__.1} parent=11 // pred_check
        %p351 = pneg %p133
      $region14: #{a_call__.1} parent=11 // pred_check_branch
        %353 = sbr.rel (%p351) target = $region16
      $region15: #{a_call__.1} parent=11 // pred_region
        _
      $region16: #{a_call__.1} parent=11 // pred_fallthru
        _
      // Predicated region
      $region17: #{a_call__.1} parent=11 // pred_check
        %p354 = pneg %p154
      $region18: #{a_call__.1} parent=11 // pred_check_branch
        %356 = sbr.rel (%p354) target = $region20
      $region19: #{a_call__.1} parent=11 // pred_region
        _
      $region20: #{a_call__.1} parent=11 // pred_fallthru
        _
      // Predicated region
      $region21: #{a_call__.1} parent=11 // pred_check
        %p357 = pneg %p175
      $region22: #{a_call__.1} parent=11 // pred_check_branch
        %359 = sbr.rel (%p357) target = $region24
      $region23: #{a_call__.1} parent=11 // pred_region
        _
      $region24: #{a_call__.1} parent=11 // pred_fallthru
        _
      // Predicated region
      $region25: #{a_call__.1} parent=11 // pred_check
        %p360 = pneg %p196
      $region26: #{a_call__.1} parent=11 // pred_check_branch
        %362 = sbr.rel (%p360) target = $region28
      $region27: #{a_call__.1} parent=11 // pred_region
        _
      $region28: #{a_call__.1} parent=11 // pred_fallthru
        _
      // Predicated region
      $region29: #{a_call__.1} parent=11 // pred_check
        %p363 = pneg %p245
      $region30: #{a_call__.1} parent=11 // pred_check_branch
        %365 = sbr.rel (%p363) target = $region32
      $region31: #{a_call__.1} parent=11 // pred_region
        _
      $region32: #{a_call__.1} parent=11 // pred_fallthru
        _
      // Predicated region
      $region33: #{a_call__.1} parent=11 // pred_check
        %p366 = pneg %p266
      $region34: #{a_call__.1} parent=11 // pred_check_branch
        %368 = sbr.rel (%p366) target = $region36
      $region35: #{a_call__.1} parent=11 // pred_region
        _
      $region36: #{a_call__.1} parent=11 // pred_fallthru
        _
      // Predicated region
      $region37: #{a_call__.1} parent=11 // pred_check
        %p369 = pneg %p287
      $region38: #{a_call__.1} parent=11 // pred_check_branch
        %371 = sbr.rel (%p369) target = $region40
      $region39: #{a_call__.1} parent=11 // pred_region
        _
      $region40: #{a_call__.1} parent=11 // pred_fallthru
        _
      // Predicated region
      $region41: #{a_call__.1} parent=11 // pred_check
        %p372 = pneg %p308
      $region42: #{a_call__.1} parent=11 // pred_check_branch
        %374 = sbr.rel (%p372) target = $region44
      $region43: #{a_call__.1} parent=11 // pred_region
        _
      $region44: #{a_call__.1} parent=11 // pred_fallthru
        _
    $region12: #{a_call__.1} parent=5 // pred_fallthru
      _
    %p375 = scmp.lt.s32.totalorder %s18, 2
    // Predicated region
    $region45: #{a_call__.1} parent=5 // pred_check
      %p376 = pneg %p375
    $region46: #{a_call__.1} parent=5 // pred_check_branch
      %378 = sbr.rel (%p376) target = $region48
    $region47: #{a_call__.1} parent=5 // pred_region
      // Predicated region
      $region49: #{a_call__.1} parent=47 // pred_check
        %p379 = pneg %p52
      $region50: #{a_call__.1} parent=47 // pred_check_branch
        %381 = sbr.rel (%p379) target = $region52
      $region51: #{a_call__.1} parent=47 // pred_region
        %p382 = scmp.lt.s32.totalorder %s25, 1
        %s383 = scalar_select %p382, %s25, 1
        %p384 = scmp.lt.s32.totalorder %s26, 0
        %s385 = scalar_select %p384, %s26, 0
        %s386 = sadd.s32 %s385, %s383
        %s387 = smul.addr %s386, 8
        %s388 = scalar_lea.vmem %s0, %s387
      $region52: #{a_call__.1} parent=47 // pred_fallthru
        _
      // Predicated region
      $region53: #{a_call__.1} parent=47 // pred_check
        %p389 = pneg %p78
      $region54: #{a_call__.1} parent=47 // pred_check_branch
        %391 = sbr.rel (%p389) target = $region56
      $region55: #{a_call__.1} parent=47 // pred_region
        %p392 = scmp.lt.s32.totalorder %s25, 1
        %s393 = scalar_select %p392, %s25, 1
        %s394 = smul.addr %s393, 4
        %s395 = smul.addr %s394, 8
        %s396 = scalar_lea.vmem %s1, %s395
      $region56: #{a_call__.1} parent=47 // pred_fallthru
        _
      // Predicated region
      $region57: #{a_call__.1} parent=47 // pred_check
        %p397 = pneg %p106
      $region58: #{a_call__.1} parent=47 // pred_check_branch
        %399 = sbr.rel (%p397) target = $region60
      $region59: #{a_call__.1} parent=47 // pred_region
        %s400 = smul.u32 8, %s26
        %p401 = scmp.lt.s32.totalorder %s25, 1
        %s402 = scalar_select %p401, %s25, 1
        %p403 = scmp.lt.s32.totalorder %s400, 7
        %s404 = scalar_select %p403, %s400, 7
        %s405 = smul.addr %s402, 8
        %s406 = sadd.s32 %s404, %s405
        %s407 = smul.addr %s406, 8
        %s408 = scalar_lea.vmem %s2, %s407
        %s409 = smul.u32 8, %s26
      $region60: #{a_call__.1} parent=47 // pred_fallthru
        _
      // Predicated region
      $region61: #{a_call__.1} parent=47 // pred_check
        %p410 = pneg %p218
      $region62: #{a_call__.1} parent=47 // pred_check_branch
        %412 = sbr.rel (%p410) target = $region64
      $region63: #{a_call__.1} parent=47 // pred_region
        %s413 = smul.u32 16, %s26
        %p414 = scmp.lt.s32.totalorder %s25, 1
        %s415 = scalar_select %p414, %s25, 1
        %p416 = scmp.lt.s32.totalorder %s413, 15
        %s417 = scalar_select %p416, %s413, 15
        %s418 = smul.addr %s415, 16
        %s419 = sadd.s32 %s417, %s418
        %s420 = smul.addr %s419, 8
        %s421 = scalar_lea.vmem %s7, %s420
        %s422 = smul.u32 16, %s26
      $region64: #{a_call__.1} parent=47 // pred_fallthru
        _
    $region48: #{a_call__.1} parent=5 // pred_fallthru
      _
    %p423 = scmp.le.s32.totalorder 1, %s18
    %p424 = scmp.lt.s32.totalorder %s18, 3
    %p425 = pnand %p423, %p424
    %p426 = pneg %p425
    // Predicated region
    $region65: #{a_call__.1} parent=5 // pred_check
      _
    $region66: #{a_call__.1} parent=5 // pred_check_branch
      %428 = sbr.rel (%p425) target = $region68
    $region67: #{a_call__.1} parent=5 // pred_region
      %s429 = ssub.s32 %s18, 1
      %p430 = scmp.lt.s32.totalorder %s27, 1
      %s431 = scalar_select %p430, %s27, 1
      %p432 = scmp.lt.s32.totalorder %s28, 0
      %s433 = scalar_select %p432, %s28, 0
      %s434 = sadd.s32 %s433, %s431
      %s435 = smul.addr %s434, 8
      %s436 = scalar_lea.vmem %s0, %s435
      %p437 = pneg %p58
      %p438 = pneg %p55
      %p439 = scmp.lt.s32.totalorder %s27, 1
      %s440 = scalar_select %p439, %s27, 1
      %s441 = smul.addr %s440, 4
      %s442 = smul.addr %s441, 8
      %s443 = scalar_lea.vmem %s1, %s442
      %p444 = pneg %p84
      %p445 = pneg %p81
      %s446 = smul.u32 8, %s28
      %p447 = scmp.lt.s32.totalorder %s27, 1
      %s448 = scalar_select %p447, %s27, 1
      %p449 = scmp.lt.s32.totalorder %s446, 7
      %s450 = scalar_select %p449, %s446, 7
      %s451 = smul.addr %s448, 8
      %s452 = sadd.s32 %s450, %s451
      %s453 = smul.addr %s452, 8
      %s454 = scalar_lea.vmem %s2, %s453
      %p455 = pneg %p112
      %p456 = pneg %p109
      %p457 = pneg %p133
      %p458 = pneg %p130
      %p459 = pneg %p154
      %p460 = pneg %p151
      %p461 = pneg %p175
      %p462 = pneg %p172
      %p463 = pneg %p196
      %p464 = pneg %p193
      %s465 = smul.u32 16, %s28
      %p466 = scmp.lt.s32.totalorder %s27, 1
      %s467 = scalar_select %p466, %s27, 1
      %p468 = scmp.lt.s32.totalorder %s465, 15
      %s469 = scalar_select %p468, %s465, 15
      %s470 = smul.addr %s467, 16
      %s471 = sadd.s32 %s469, %s470
      %s472 = smul.addr %s471, 8
      %s473 = scalar_lea.vmem %s7, %s472
      %p474 = pneg %p224
      %p475 = pneg %p221
      %p476 = pneg %p245
      %p477 = pneg %p242
      %p478 = pneg %p266
      %p479 = pneg %p263
      %p480 = pneg %p287
      %p481 = pneg %p284
      %p482 = pneg %p308
      %p483 = pneg %p305
      %p484 = pneg %p336
      %p485 = pneg %p333
      %p486 = scmp.lt.s32.totalorder %s27, 1
      %s487 = scalar_select %p486, %s27, 1
      %p488 = scmp.lt.s32.totalorder %s28, 0
      %s489 = scalar_select %p488, %s28, 0
      %s490 = smul.addr %s489, 2
      %s491 = smul.addr %s487, 2
      %s492 = sadd.s32 %s490, %s491
      %s493 = smul.addr %s492, 8
      %s494 = scalar_lea.vmem %s12, %s493
      %p495 = scmp.lt.s32.totalorder %s27, 1
      %s496 = scalar_select %p495, %s27, 1
      %p497 = scmp.lt.s32.totalorder %s28, 0
      %s498 = scalar_select %p497, %s28, 0
      %s499 = sadd.s32 %s498, %s496
      %s500 = smul.addr %s499, 8
      %s501 = scalar_lea.vmem %s0, %s500
      %p502 = scmp.lt.s32.totalorder %s27, 1
      %s503 = scalar_select %p502, %s27, 1
      %s504 = smul.addr %s503, 4
      %s505 = smul.addr %s504, 8
      %s506 = scalar_lea.vmem %s1, %s505
      %s507 = smul.u32 8, %s28
      %p508 = scmp.lt.s32.totalorder %s27, 1
      %s509 = scalar_select %p508, %s27, 1
      %p510 = scmp.lt.s32.totalorder %s507, 7
      %s511 = scalar_select %p510, %s507, 7
      %s512 = smul.addr %s509, 8
      %s513 = sadd.s32 %s511, %s512
      %s514 = smul.addr %s513, 8
      %s515 = scalar_lea.vmem %s2, %s514
      %s516 = smul.u32 8, %s28
      %s517 = smul.u32 16, %s28
      %p518 = scmp.lt.s32.totalorder %s27, 1
      %s519 = scalar_select %p518, %s27, 1
      %p520 = scmp.lt.s32.totalorder %s517, 15
      %s521 = scalar_select %p520, %s517, 15
      %s522 = smul.addr %s519, 16
      %s523 = sadd.s32 %s521, %s522
      %s524 = smul.addr %s523, 8
      %s525 = scalar_lea.vmem %s7, %s524
      %s526 = smul.u32 16, %s28
      %p527 = scmp.lt.s32.totalorder %s27, 1
      %s528 = scalar_select %p527, %s27, 1
      %p529 = scmp.lt.s32.totalorder %s28, 0
      %s530 = scalar_select %p529, %s28, 0
      %s531 = smul.addr %s530, 2
      %s532 = smul.addr %s528, 2
      %s533 = sadd.s32 %s531, %s532
      %s534 = smul.addr %s533, 8
      %s535 = scalar_lea.vmem %s12, %s534
      %v537 = vld [vmem:[%s506] sm:$0xff]
      %v538 = vld [vmem:[%s506 + $0x8] sm:$0xff]
      %v539 = vld [vmem:[%s506 + $0x10] sm:$0xff]
      %v540 = vld [vmem:[%s506 + $0x18] sm:$0xff]
      %v541 = vld [vmem:[%s501] sm:$0xff]
      %v542 = vld [vmem:[%s515] sm:$0xff]
      %v543 = vld [vmem:[%s515 + $0x8] sm:$0xff]
      %v544 = vld [vmem:[%s515 + $0x10] sm:$0xff]
      %v545 = vld [vmem:[%s515 + $0x18] sm:$0xff]
      %v546 = vld [vmem:[%s515 + $0x20] sm:$0xff]
      %v547 = vld [vmem:[%s515 + $0x28] sm:$0xff]
      %v548 = vld [vmem:[%s515 + $0x30] sm:$0xff]
      %v549 = vld [vmem:[%s515 + $0x38] sm:$0xff]
      %v550 = vlaneseq
      %v551 = vand.u32 %v550, 127
      %552 = vset.pattern.permute.xlu0 0
      %553 = vperm.xlu0 %552, %v542
      %v554 = vpop.permute.xlu0 %553
      %555 = vset.pattern.permute.xlu0 0
      %556 = vperm.xlu0 %555, %v543
      %v557 = vpop.permute.xlu0 %556
      %558 = vset.pattern.permute.xlu0 0
      %559 = vperm.xlu0 %558, %v544
      %v560 = vpop.permute.xlu0 %559
      %561 = vset.pattern.permute.xlu0 0
      %562 = vperm.xlu0 %561, %v545
      %v563 = vpop.permute.xlu0 %562
      %564 = vset.pattern.permute.xlu0 0
      %565 = vperm.xlu0 %564, %v546
      %v566 = vpop.permute.xlu0 %565
      %567 = vset.pattern.permute.xlu0 0
      %568 = vperm.xlu0 %567, %v547
      %v569 = vpop.permute.xlu0 %568
      %570 = vset.pattern.permute.xlu0 0
      %571 = vperm.xlu0 %570, %v548
      %v572 = vpop.permute.xlu0 %571
      %573 = vset.pattern.permute.xlu0 0
      %574 = vperm.xlu0 %573, %v549
      %v575 = vpop.permute.xlu0 %574
      %vm576 = vcmp.eq.s32.totalorder %v554, %v551
      %vm577 = vcmp.eq.s32.totalorder %v557, %v551
      %vm578 = vcmp.eq.s32.totalorder %v560, %v551
      %vm579 = vcmp.eq.s32.totalorder %v563, %v551
      %vm580 = vcmp.eq.s32.totalorder %v566, %v551
      %vm581 = vcmp.eq.s32.totalorder %v569, %v551
      %vm582 = vcmp.eq.s32.totalorder %v572, %v551
      %vm583 = vcmp.eq.s32.totalorder %v575, %v551
      %v584 = vsel %vm576, 1, 0
      %v585 = vsel %vm577, 1, 0
      %v586 = vsel %vm578, 1, 0
      %v587 = vsel %vm579, 1, 0
      %v588 = vsel %vm580, 1, 0
      %v589 = vsel %vm581, 1, 0
      %v590 = vsel %vm582, 1, 0
      %v591 = vsel %vm583, 1, 0
      %v592 = vcvt.s32.f32 %v584
      %v593 = vcvt.s32.f32 %v585
      %v594 = vcvt.s32.f32 %v586
      %v595 = vcvt.s32.f32 %v587
      %v596 = vcvt.s32.f32 %v588
      %v597 = vcvt.s32.f32 %v589
      %v598 = vcvt.s32.f32 %v590
      %v599 = vcvt.s32.f32 %v591
      %vm600 = vcmask 261120
      %v602 = vsel %vm600, %v592, 0
      %v605 = vsel %vm600, %v593, 0
      %v608 = vsel %vm600, %v594, 0
      %v611 = vsel %vm600, %v595, 0
      %v614 = vsel %vm600, %v596, 0
      %v617 = vsel %vm600, %v597, 0
      %v620 = vsel %vm600, %v598, 0
      %v623 = vsel %vm600, %v599, 0
      %625 = vmatpush.msra.mxu0 0.0
      %626 = vmatpush.msra.mxu0 0.0
      %627 = vmatpush.msra.mxu0 0.0
      %628 = vmatpush.msra.mxu0 0.0
      %629 = vmatpush.msra.mxu0 0.0
      %630 = vmatpush.msra.mxu0 0.0
      %631 = vmatpush.msra.mxu0 0.0
      %632 = vmatpush.msra.mxu0 0.0
      %633 = vmatpush.msra.mxu0 0.0
      %634 = vmatpush.msra.mxu0 0.0
      %635 = vmatpush.msra.mxu0 0.0
      %636 = vmatpush.msra.mxu0 0.0
      %637 = vmatpush.msra.mxu0 %v540
      %638 = vmatpush.msra.mxu0 %v539
      %639 = vmatpush.msra.mxu0 %v538
      %640 = vmatpush.msra.mxu0 %v537
      %641 = vmatmul.f32.gmra.mxu0 %v602
      %v642 = vpop.f32.mrf.mxu0
      %v643 = vadd.f32 0.0, %v642
      %644 = vmatmul.f32.gmra.mxu0 %v605
      %v645 = vpop.f32.mrf.mxu0
      %v646 = vadd.f32 0.0, %v645
      %647 = vmatmul.f32.gmra.mxu0 %v608
      %v648 = vpop.f32.mrf.mxu0
      %v649 = vadd.f32 0.0, %v648
      %650 = vmatmul.f32.gmra.mxu0 %v611
      %v651 = vpop.f32.mrf.mxu0
      %v652 = vadd.f32 0.0, %v651
      %653 = vmatmul.f32.gmra.mxu0 %v614
      %v654 = vpop.f32.mrf.mxu0
      %v655 = vadd.f32 0.0, %v654
      %656 = vmatmul.f32.gmra.mxu0 %v617
      %v657 = vpop.f32.mrf.mxu0
      %v658 = vadd.f32 0.0, %v657
      %659 = vmatmul.f32.gmra.mxu0 %v620
      %v660 = vpop.f32.mrf.mxu0
      %v661 = vadd.f32 0.0, %v660
      %662 = vmatmul.f32.gmra.mxu0 %v623
      %v663 = vpop.f32.mrf.mxu0
      %v664 = vadd.f32 0.0, %v663
      %665 = vdwg.mxu0
      %vm666 = vcmp.ge.s32.totalorder %v542, 0
      %vm667 = vcmp.ge.s32.totalorder %v543, 0
      %vm668 = vcmp.ge.s32.totalorder %v544, 0
      %vm669 = vcmp.ge.s32.totalorder %v545, 0
      %vm670 = vcmp.ge.s32.totalorder %v546, 0
      %vm671 = vcmp.ge.s32.totalorder %v547, 0
      %vm672 = vcmp.ge.s32.totalorder %v548, 0
      %vm673 = vcmp.ge.s32.totalorder %v549, 0
      %v674 = vsel %vm666, 1, 0
      %v675 = vsel %vm667, 1, 0
      %v676 = vsel %vm668, 1, 0
      %v677 = vsel %vm669, 1, 0
      %v678 = vsel %vm670, 1, 0
      %v679 = vsel %vm671, 1, 0
      %v680 = vsel %vm672, 1, 0
      %v681 = vsel %vm673, 1, 0
      %v682 = vcvt.s32.f32 %v674
      %v683 = vcvt.s32.f32 %v675
      %v684 = vcvt.s32.f32 %v676
      %v685 = vcvt.s32.f32 %v677
      %v686 = vcvt.s32.f32 %v678
      %v687 = vcvt.s32.f32 %v679
      %v688 = vcvt.s32.f32 %v680
      %v689 = vcvt.s32.f32 %v681
      %v691 = vrot.slane %v541, 1
      %v692 = vrot.slane %v541, 2
      %v693 = vrot.slane %v541, 3
      %v694 = vrot.slane %v541, 4
      %v695 = vrot.slane %v541, 5
      %v696 = vrot.slane %v541, 6
      %v697 = vrot.slane %v541, 7
      %v698 = vperm.slane %v541, 0
      %v699 = vperm.slane %v691, 0
      %v700 = vperm.slane %v692, 0
      %v701 = vperm.slane %v693, 0
      %v702 = vperm.slane %v694, 0
      %v703 = vperm.slane %v695, 0
      %v704 = vperm.slane %v696, 0
      %v705 = vperm.slane %v697, 0
      %v714 = vsub.f32 %v643, %v698
      %v715 = vsub.f32 %v646, %v699
      %v716 = vsub.f32 %v649, %v700
      %v717 = vsub.f32 %v652, %v701
      %v718 = vsub.f32 %v655, %v702
      %v719 = vsub.f32 %v658, %v703
      %v720 = vsub.f32 %v661, %v704
      %v721 = vsub.f32 %v664, %v705
      %723 = vset.pattern.permute.xlu0 0
      %724 = vperm.xlu0 %723, %v682
      %v725 = vpop.permute.xlu0 %724
      %728 = vset.pattern.permute.xlu0 0
      %729 = vperm.xlu0 %728, %v683
      %v730 = vpop.permute.xlu0 %729
      %733 = vset.pattern.permute.xlu0 0
      %734 = vperm.xlu0 %733, %v684
      %v735 = vpop.permute.xlu0 %734
      %738 = vset.pattern.permute.xlu0 0
      %739 = vperm.xlu0 %738, %v685
      %v740 = vpop.permute.xlu0 %739
      %743 = vset.pattern.permute.xlu0 0
      %744 = vperm.xlu0 %743, %v686
      %v745 = vpop.permute.xlu0 %744
      %748 = vset.pattern.permute.xlu0 0
      %749 = vperm.xlu0 %748, %v687
      %v750 = vpop.permute.xlu0 %749
      %753 = vset.pattern.permute.xlu0 0
      %754 = vperm.xlu0 %753, %v688
      %v755 = vpop.permute.xlu0 %754
      %758 = vset.pattern.permute.xlu0 0
      %759 = vperm.xlu0 %758, %v689
      %v760 = vpop.permute.xlu0 %759
      %v762 = vmul.f32 %v714, %v725
      %v763 = vmul.f32 %v715, %v730
      %v764 = vmul.f32 %v716, %v735
      %v765 = vmul.f32 %v717, %v740
      %v766 = vmul.f32 %v718, %v745
      %v767 = vmul.f32 %v719, %v750
      %v768 = vmul.f32 %v720, %v755
      %v769 = vmul.f32 %v721, %v760
      %v770 = vpack.c.bf16 %v763, %v762
      %v771 = vpack.c.bf16 %v765, %v764
      %v772 = vpack.c.bf16 %v767, %v766
      %v773 = vpack.c.bf16 %v769, %v768
      %v774 = vld [vmem:[%s3] sm:$0x7]
      %v775 = vld [vmem:[%s4] sm:$0x1]
      %v777 = vperm.slane %v775, 0
      %vm779 = vcmask 48128
      %v781 = vsel %vm779, %v770, 0
      %v784 = vsel %vm779, %v771, 0
      %v787 = vsel %vm779, %v772, 0
      %v790 = vsel %vm779, %v773, 0
      %vm792 = vcmask 1042432
      %v794 = vsel %vm792, %v774, 0
      %796 = vmatpush.bf16.msra.mxu0 0
      %797 = vmatpush.bf16.msra.mxu0 0
      %798 = vmatpush.bf16.msra.mxu0 0
      %799 = vmatpush.bf16.msra.mxu0 0
      %800 = vmatpush.bf16.msra.mxu0 0
      %801 = vmatpush.bf16.msra.mxu0 0
      %802 = vmatpush.bf16.msra.mxu0 0
      %803 = vmatpush.bf16.msra.mxu0 %v794
      %804 = vmatmul.bf16.gmra.mxu0 %v781
      %v805 = vpop.f32.mrf.mxu0
      %v806 = vadd.f32 %v777, %v805
      %v807 = vpop.f32.mrf.mxu0
      %v808 = vadd.f32 %v777, %v807
      %809 = vmatmul.bf16.gmra.mxu0 %v784
      %v810 = vpop.f32.mrf.mxu0
      %v811 = vadd.f32 %v777, %v810
      %v812 = vpop.f32.mrf.mxu0
      %v813 = vadd.f32 %v777, %v812
      %814 = vmatmul.bf16.gmra.mxu0 %v787
      %v815 = vpop.f32.mrf.mxu0
      %v816 = vadd.f32 %v777, %v815
      %v817 = vpop.f32.mrf.mxu0
      %v818 = vadd.f32 %v777, %v817
      %819 = vmatmul.bf16.gmra.mxu0 %v790
      %v820 = vpop.f32.mrf.mxu0
      %v821 = vadd.f32 %v777, %v820
      %v822 = vpop.f32.mrf.mxu0
      %v823 = vadd.f32 %v777, %v822
      %824 = vdwg.mxu0
      %v825 = vmax.f32 %v806, 0.0
      %v826 = vmax.f32 %v808, 0.0
      %v827 = vmax.f32 %v811, 0.0
      %v828 = vmax.f32 %v813, 0.0
      %v829 = vmax.f32 %v816, 0.0
      %v830 = vmax.f32 %v818, 0.0
      %v831 = vmax.f32 %v821, 0.0
      %v832 = vmax.f32 %v823, 0.0
      %v833 = vpack.c.bf16 %v826, %v825
      %v834 = vpack.c.bf16 %v828, %v827
      %v835 = vpack.c.bf16 %v830, %v829
      %v836 = vpack.c.bf16 %v832, %v831
      %v837 = vld [vmem:[%s5] sm:$0xf]
      %v838 = vld [vmem:[%s5 + $0x4] sm:$0xf]
      %v839 = vld [vmem:[%s5 + $0x8] sm:$0xf]
      %v840 = vld [vmem:[%s5 + $0xc] sm:$0xf]
      %v841 = vld [vmem:[%s5 + $0x10] sm:$0xf]
      %v842 = vld [vmem:[%s5 + $0x14] sm:$0xf]
      %v843 = vld [vmem:[%s5 + $0x18] sm:$0xf]
      %v844 = vld [vmem:[%s5 + $0x1c] sm:$0xf]
      %v845 = vld [vmem:[%s5 + $0x20] sm:$0xf]
      %v846 = vld [vmem:[%s5 + $0x24] sm:$0xf]
      %v847 = vld [vmem:[%s5 + $0x28] sm:$0xf]
      %v848 = vld [vmem:[%s5 + $0x2c] sm:$0xf]
      %v849 = vld [vmem:[%s5 + $0x30] sm:$0xf]
      %v850 = vld [vmem:[%s5 + $0x34] sm:$0xf]
      %v851 = vld [vmem:[%s5 + $0x38] sm:$0xf]
      %v852 = vld [vmem:[%s5 + $0x3c] sm:$0xf]
      %v853 = vld [vmem:[%s6] sm:$0x1]
      %v855 = vperm.slane %v853, 0
      %v873 = vunpack.c.l.b16 %v837
      %v874 = vunpack.c.l.b16 %v838
      %v875 = vunpack.c.l.b16 %v839
      %v876 = vunpack.c.l.b16 %v840
      %v877 = vunpack.c.l.b16 %v841
      %v878 = vunpack.c.l.b16 %v842
      %v879 = vunpack.c.l.b16 %v843
      %v880 = vunpack.c.l.b16 %v844
      %v881 = vunpack.c.l.b16 %v845
      %v882 = vunpack.c.l.b16 %v846
      %v883 = vunpack.c.l.b16 %v847
      %v884 = vunpack.c.l.b16 %v848
      %v885 = vunpack.c.l.b16 %v849
      %v886 = vunpack.c.l.b16 %v850
      %v887 = vunpack.c.l.b16 %v851
      %v888 = vunpack.c.l.b16 %v852
      %v889 = vpack.c.b16 %v874, %v873
      %v890 = vpack.c.b16 %v876, %v875
      %v891 = vpack.c.b16 %v878, %v877
      %v892 = vpack.c.b16 %v880, %v879
      %v893 = vpack.c.b16 %v882, %v881
      %v894 = vpack.c.b16 %v884, %v883
      %v895 = vpack.c.b16 %v886, %v885
      %v896 = vpack.c.b16 %v888, %v887
      %905 = vmatpush.bf16.msra.mxu0 %v896
      %906 = vmatpush.bf16.msra.mxu0 %v895
      %907 = vmatpush.bf16.msra.mxu0 %v894
      %908 = vmatpush.bf16.msra.mxu0 %v893
      %909 = vmatpush.bf16.msra.mxu0 %v892
      %910 = vmatpush.bf16.msra.mxu0 %v891
      %911 = vmatpush.bf16.msra.mxu0 %v890
      %912 = vmatpush.bf16.msra.mxu0 %v889
      %913 = vmatmul.bf16.gmra.mxu0 %v833
      %v914 = vpop.f32.mrf.mxu0
      %v915 = vadd.f32 %v855, %v914
      %v916 = vpop.f32.mrf.mxu0
      %v917 = vadd.f32 %v855, %v916
      %918 = vmatmul.bf16.gmra.mxu0 %v834
      %v919 = vpop.f32.mrf.mxu0
      %v920 = vadd.f32 %v855, %v919
      %v921 = vpop.f32.mrf.mxu0
      %v922 = vadd.f32 %v855, %v921
      %923 = vmatmul.bf16.gmra.mxu0 %v835
      %v924 = vpop.f32.mrf.mxu0
      %v925 = vadd.f32 %v855, %v924
      %v926 = vpop.f32.mrf.mxu0
      %v927 = vadd.f32 %v855, %v926
      %928 = vmatmul.bf16.gmra.mxu0 %v836
      %v929 = vpop.f32.mrf.mxu0
      %v930 = vadd.f32 %v855, %v929
      %v931 = vpop.f32.mrf.mxu0
      %v932 = vadd.f32 %v855, %v931
      %933 = vdwg.mxu0
      %v934 = vmax.f32 %v915, 0.0
      %v935 = vmax.f32 %v917, 0.0
      %v936 = vmax.f32 %v920, 0.0
      %v937 = vmax.f32 %v922, 0.0
      %v938 = vmax.f32 %v925, 0.0
      %v939 = vmax.f32 %v927, 0.0
      %v940 = vmax.f32 %v930, 0.0
      %v941 = vmax.f32 %v932, 0.0
      %v942 = vrot.slane %v934, 4
      %v943 = vmax.f32 %v934, %v942
      %v944 = vrot.slane %v943, 2
      %v945 = vmax.f32 %v943, %v944
      %v946 = vrot.slane %v945, 1
      %v947 = vmax.f32 %v945, %v946
      %v948 = vrot.slane %v935, 4
      %v949 = vmax.f32 %v935, %v948
      %v950 = vrot.slane %v949, 2
      %v951 = vmax.f32 %v949, %v950
      %v952 = vrot.slane %v951, 1
      %v953 = vmax.f32 %v951, %v952
      %v954 = vrot.slane %v936, 4
      %v955 = vmax.f32 %v936, %v954
      %v956 = vrot.slane %v955, 2
      %v957 = vmax.f32 %v955, %v956
      %v958 = vrot.slane %v957, 1
      %v959 = vmax.f32 %v957, %v958
      %v960 = vrot.slane %v937, 4
      %v961 = vmax.f32 %v937, %v960
      %v962 = vrot.slane %v961, 2
      %v963 = vmax.f32 %v961, %v962
      %v964 = vrot.slane %v963, 1
      %v965 = vmax.f32 %v963, %v964
      %v966 = vrot.slane %v938, 4
      %v967 = vmax.f32 %v938, %v966
      %v968 = vrot.slane %v967, 2
      %v969 = vmax.f32 %v967, %v968
      %v970 = vrot.slane %v969, 1
      %v971 = vmax.f32 %v969, %v970
      %v972 = vrot.slane %v939, 4
      %v973 = vmax.f32 %v939, %v972
      %v974 = vrot.slane %v973, 2
      %v975 = vmax.f32 %v973, %v974
      %v976 = vrot.slane %v975, 1
      %v977 = vmax.f32 %v975, %v976
      %v978 = vrot.slane %v940, 4
      %v979 = vmax.f32 %v940, %v978
      %v980 = vrot.slane %v979, 2
      %v981 = vmax.f32 %v979, %v980
      %v982 = vrot.slane %v981, 1
      %v983 = vmax.f32 %v981, %v982
      %v984 = vrot.slane %v941, 4
      %v985 = vmax.f32 %v941, %v984
      %v986 = vrot.slane %v985, 2
      %v987 = vmax.f32 %v985, %v986
      %v988 = vrot.slane %v987, 1
      %v989 = vmax.f32 %v987, %v988
      %vm998 = vcmask 1041409
      %v999 = vsel %vm998, %v953, %v947
      %vm1000 = vcmask 1042434
      %v1001 = vsel %vm1000, %v959, %v999
      %vm1002 = vcmask 1043459
      %v1003 = vsel %vm1002, %v965, %v1001
      %vm1004 = vcmask 1044484
      %v1005 = vsel %vm1004, %v971, %v1003
      %vm1006 = vcmask 1045509
      %v1007 = vsel %vm1006, %v977, %v1005
      %vm1008 = vcmask 1046534
      %v1009 = vsel %vm1008, %v983, %v1007
      %vm1010 = vcmask 1047559
      %v1011 = vsel %vm1010, %v989, %v1009
      %1013 = vst [vmem:[%s535] sm:$0xff] %v1011
      %v1014 = vld [vmem:[%s525] sm:$0xff]
      %v1015 = vld [vmem:[%s525 + $0x8] sm:$0xff]
      %v1016 = vld [vmem:[%s525 + $0x10] sm:$0xff]
      %v1017 = vld [vmem:[%s525 + $0x18] sm:$0xff]
      %v1018 = vld [vmem:[%s525 + $0x20] sm:$0xff]
      %v1019 = vld [vmem:[%s525 + $0x28] sm:$0xff]
      %v1020 = vld [vmem:[%s525 + $0x30] sm:$0xff]
      %v1021 = vld [vmem:[%s525 + $0x38] sm:$0xff]
      %v1022 = vld [vmem:[%s525 + $0x40] sm:$0xff]
      %v1023 = vld [vmem:[%s525 + $0x48] sm:$0xff]
      %v1024 = vld [vmem:[%s525 + $0x50] sm:$0xff]
      %v1025 = vld [vmem:[%s525 + $0x58] sm:$0xff]
      %v1026 = vld [vmem:[%s525 + $0x60] sm:$0xff]
      %v1027 = vld [vmem:[%s525 + $0x68] sm:$0xff]
      %v1028 = vld [vmem:[%s525 + $0x70] sm:$0xff]
      %v1029 = vld [vmem:[%s525 + $0x78] sm:$0xff]
      %1030 = vset.pattern.permute.xlu0 0
      %1031 = vperm.xlu0 %1030, %v1014
      %v1032 = vpop.permute.xlu0 %1031
      %1033 = vset.pattern.permute.xlu0 0
      %1034 = vperm.xlu0 %1033, %v1015
      %v1035 = vpop.permute.xlu0 %1034
      %1036 = vset.pattern.permute.xlu0 0
      %1037 = vperm.xlu0 %1036, %v1016
      %v1038 = vpop.permute.xlu0 %1037
      %1039 = vset.pattern.permute.xlu0 0
      %1040 = vperm.xlu0 %1039, %v1017
      %v1041 = vpop.permute.xlu0 %1040
      %1042 = vset.pattern.permute.xlu0 0
      %1043 = vperm.xlu0 %1042, %v1018
      %v1044 = vpop.permute.xlu0 %1043
      %1045 = vset.pattern.permute.xlu0 0
      %1046 = vperm.xlu0 %1045, %v1019
      %v1047 = vpop.permute.xlu0 %1046
      %1048 = vset.pattern.permute.xlu0 0
      %1049 = vperm.xlu0 %1048, %v1020
      %v1050 = vpop.permute.xlu0 %1049
      %1051 = vset.pattern.permute.xlu0 0
      %1052 = vperm.xlu0 %1051, %v1021
      %v1053 = vpop.permute.xlu0 %1052
      %1054 = vset.pattern.permute.xlu0 0
      %1055 = vperm.xlu0 %1054, %v1022
      %v1056 = vpop.permute.xlu0 %1055
      %1057 = vset.pattern.permute.xlu0 0
      %1058 = vperm.xlu0 %1057, %v1023
      %v1059 = vpop.permute.xlu0 %1058
      %1060 = vset.pattern.permute.xlu0 0
      %1061 = vperm.xlu0 %1060, %v1024
      %v1062 = vpop.permute.xlu0 %1061
      %1063 = vset.pattern.permute.xlu0 0
      %1064 = vperm.xlu0 %1063, %v1025
      %v1065 = vpop.permute.xlu0 %1064
      %1066 = vset.pattern.permute.xlu0 0
      %1067 = vperm.xlu0 %1066, %v1026
      %v1068 = vpop.permute.xlu0 %1067
      %1069 = vset.pattern.permute.xlu0 0
      %1070 = vperm.xlu0 %1069, %v1027
      %v1071 = vpop.permute.xlu0 %1070
      %1072 = vset.pattern.permute.xlu0 0
      %1073 = vperm.xlu0 %1072, %v1028
      %v1074 = vpop.permute.xlu0 %1073
      %1075 = vset.pattern.permute.xlu0 0
      %1076 = vperm.xlu0 %1075, %v1029
      %v1077 = vpop.permute.xlu0 %1076
      %vm1078 = vcmp.eq.s32.totalorder %v1032, %v551
      %vm1079 = vcmp.eq.s32.totalorder %v1035, %v551
      %vm1080 = vcmp.eq.s32.totalorder %v1038, %v551
      %vm1081 = vcmp.eq.s32.totalorder %v1041, %v551
      %vm1082 = vcmp.eq.s32.totalorder %v1044, %v551
      %vm1083 = vcmp.eq.s32.totalorder %v1047, %v551
      %vm1084 = vcmp.eq.s32.totalorder %v1050, %v551
      %vm1085 = vcmp.eq.s32.totalorder %v1053, %v551
      %vm1086 = vcmp.eq.s32.totalorder %v1056, %v551
      %vm1087 = vcmp.eq.s32.totalorder %v1059, %v551
      %vm1088 = vcmp.eq.s32.totalorder %v1062, %v551
      %vm1089 = vcmp.eq.s32.totalorder %v1065, %v551
      %vm1090 = vcmp.eq.s32.totalorder %v1068, %v551
      %vm1091 = vcmp.eq.s32.totalorder %v1071, %v551
      %vm1092 = vcmp.eq.s32.totalorder %v1074, %v551
      %vm1093 = vcmp.eq.s32.totalorder %v1077, %v551
      %v1094 = vsel %vm1078, 1, 0
      %v1095 = vsel %vm1079, 1, 0
      %v1096 = vsel %vm1080, 1, 0
      %v1097 = vsel %vm1081, 1, 0
      %v1098 = vsel %vm1082, 1, 0
      %v1099 = vsel %vm1083, 1, 0
      %v1100 = vsel %vm1084, 1, 0
      %v1101 = vsel %vm1085, 1, 0
      %v1102 = vsel %vm1086, 1, 0
      %v1103 = vsel %vm1087, 1, 0
      %v1104 = vsel %vm1088, 1, 0
      %v1105 = vsel %vm1089, 1, 0
      %v1106 = vsel %vm1090, 1, 0
      %v1107 = vsel %vm1091, 1, 0
      %v1108 = vsel %vm1092, 1, 0
      %v1109 = vsel %vm1093, 1, 0
      %v1110 = vcvt.s32.f32 %v1094
      %v1111 = vcvt.s32.f32 %v1095
      %v1112 = vcvt.s32.f32 %v1096
      %v1113 = vcvt.s32.f32 %v1097
      %v1114 = vcvt.s32.f32 %v1098
      %v1115 = vcvt.s32.f32 %v1099
      %v1116 = vcvt.s32.f32 %v1100
      %v1117 = vcvt.s32.f32 %v1101
      %v1118 = vcvt.s32.f32 %v1102
      %v1119 = vcvt.s32.f32 %v1103
      %v1120 = vcvt.s32.f32 %v1104
      %v1121 = vcvt.s32.f32 %v1105
      %v1122 = vcvt.s32.f32 %v1106
      %v1123 = vcvt.s32.f32 %v1107
      %v1124 = vcvt.s32.f32 %v1108
      %v1125 = vcvt.s32.f32 %v1109
      %v1127 = vsel %vm600, %v1110, 0
      %v1130 = vsel %vm600, %v1111, 0
      %v1133 = vsel %vm600, %v1112, 0
      %v1136 = vsel %vm600, %v1113, 0
      %v1139 = vsel %vm600, %v1114, 0
      %v1142 = vsel %vm600, %v1115, 0
      %v1145 = vsel %vm600, %v1116, 0
      %v1148 = vsel %vm600, %v1117, 0
      %v1151 = vsel %vm600, %v1118, 0
      %v1154 = vsel %vm600, %v1119, 0
      %v1157 = vsel %vm600, %v1120, 0
      %v1160 = vsel %vm600, %v1121, 0
      %v1163 = vsel %vm600, %v1122, 0
      %v1166 = vsel %vm600, %v1123, 0
      %v1169 = vsel %vm600, %v1124, 0
      %v1172 = vsel %vm600, %v1125, 0
      %1174 = vmatpush.msra.mxu0 0.0
      %1175 = vmatpush.msra.mxu0 0.0
      %1176 = vmatpush.msra.mxu0 0.0
      %1177 = vmatpush.msra.mxu0 0.0
      %1178 = vmatpush.msra.mxu0 0.0
      %1179 = vmatpush.msra.mxu0 0.0
      %1180 = vmatpush.msra.mxu0 0.0
      %1181 = vmatpush.msra.mxu0 0.0
      %1182 = vmatpush.msra.mxu0 0.0
      %1183 = vmatpush.msra.mxu0 0.0
      %1184 = vmatpush.msra.mxu0 0.0
      %1185 = vmatpush.msra.mxu0 0.0
      %1186 = vmatpush.msra.mxu0 %v540
      %1187 = vmatpush.msra.mxu0 %v539
      %1188 = vmatpush.msra.mxu0 %v538
      %1189 = vmatpush.msra.mxu0 %v537
      %1190 = vmatmul.f32.gmra.mxu0 %v1127
      %v1191 = vpop.f32.mrf.mxu0
      %v1192 = vadd.f32 0.0, %v1191
      %1193 = vmatmul.f32.gmra.mxu0 %v1130
      %v1194 = vpop.f32.mrf.mxu0
      %v1195 = vadd.f32 0.0, %v1194
      %1196 = vmatmul.f32.gmra.mxu0 %v1133
      %v1197 = vpop.f32.mrf.mxu0
      %v1198 = vadd.f32 0.0, %v1197
      %1199 = vmatmul.f32.gmra.mxu0 %v1136
      %v1200 = vpop.f32.mrf.mxu0
      %v1201 = vadd.f32 0.0, %v1200
      %1202 = vmatmul.f32.gmra.mxu0 %v1139
      %v1203 = vpop.f32.mrf.mxu0
      %v1204 = vadd.f32 0.0, %v1203
      %1205 = vmatmul.f32.gmra.mxu0 %v1142
      %v1206 = vpop.f32.mrf.mxu0
      %v1207 = vadd.f32 0.0, %v1206
      %1208 = vmatmul.f32.gmra.mxu0 %v1145
      %v1209 = vpop.f32.mrf.mxu0
      %v1210 = vadd.f32 0.0, %v1209
      %1211 = vmatmul.f32.gmra.mxu0 %v1148
      %v1212 = vpop.f32.mrf.mxu0
      %v1213 = vadd.f32 0.0, %v1212
      %1214 = vmatmul.f32.gmra.mxu0 %v1151
      %v1215 = vpop.f32.mrf.mxu0
      %v1216 = vadd.f32 0.0, %v1215
      %1217 = vmatmul.f32.gmra.mxu0 %v1154
      %v1218 = vpop.f32.mrf.mxu0
      %v1219 = vadd.f32 0.0, %v1218
      %1220 = vmatmul.f32.gmra.mxu0 %v1157
      %v1221 = vpop.f32.mrf.mxu0
      %v1222 = vadd.f32 0.0, %v1221
      %1223 = vmatmul.f32.gmra.mxu0 %v1160
      %v1224 = vpop.f32.mrf.mxu0
      %v1225 = vadd.f32 0.0, %v1224
      %1226 = vmatmul.f32.gmra.mxu0 %v1163
      %v1227 = vpop.f32.mrf.mxu0
      %v1228 = vadd.f32 0.0, %v1227
      %1229 = vmatmul.f32.gmra.mxu0 %v1166
      %v1230 = vpop.f32.mrf.mxu0
      %v1231 = vadd.f32 0.0, %v1230
      %1232 = vmatmul.f32.gmra.mxu0 %v1169
      %v1233 = vpop.f32.mrf.mxu0
      %v1234 = vadd.f32 0.0, %v1233
      %1235 = vmatmul.f32.gmra.mxu0 %v1172
      %v1236 = vpop.f32.mrf.mxu0
      %v1237 = vadd.f32 0.0, %v1236
      %1238 = vdwg.mxu0
      %vm1239 = vcmp.ge.s32.totalorder %v1014, 0
      %vm1240 = vcmp.ge.s32.totalorder %v1015, 0
      %vm1241 = vcmp.ge.s32.totalorder %v1016, 0
      %vm1242 = vcmp.ge.s32.totalorder %v1017, 0
      %vm1243 = vcmp.ge.s32.totalorder %v1018, 0
      %vm1244 = vcmp.ge.s32.totalorder %v1019, 0
      %vm1245 = vcmp.ge.s32.totalorder %v1020, 0
      %vm1246 = vcmp.ge.s32.totalorder %v1021, 0
      %vm1247 = vcmp.ge.s32.totalorder %v1022, 0
      %vm1248 = vcmp.ge.s32.totalorder %v1023, 0
      %vm1249 = vcmp.ge.s32.totalorder %v1024, 0
      %vm1250 = vcmp.ge.s32.totalorder %v1025, 0
      %vm1251 = vcmp.ge.s32.totalorder %v1026, 0
      %vm1252 = vcmp.ge.s32.totalorder %v1027, 0
      %vm1253 = vcmp.ge.s32.totalorder %v1028, 0
      %vm1254 = vcmp.ge.s32.totalorder %v1029, 0
      %v1255 = vsel %vm1239, 1, 0
      %v1256 = vsel %vm1240, 1, 0
      %v1257 = vsel %vm1241, 1, 0
      %v1258 = vsel %vm1242, 1, 0
      %v1259 = vsel %vm1243, 1, 0
      %v1260 = vsel %vm1244, 1, 0
      %v1261 = vsel %vm1245, 1, 0
      %v1262 = vsel %vm1246, 1, 0
      %v1263 = vsel %vm1247, 1, 0
      %v1264 = vsel %vm1248, 1, 0
      %v1265 = vsel %vm1249, 1, 0
      %v1266 = vsel %vm1250, 1, 0
      %v1267 = vsel %vm1251, 1, 0
      %v1268 = vsel %vm1252, 1, 0
      %v1269 = vsel %vm1253, 1, 0
      %v1270 = vsel %vm1254, 1, 0
      %v1271 = vcvt.s32.f32 %v1255
      %v1272 = vcvt.s32.f32 %v1256
      %v1273 = vcvt.s32.f32 %v1257
      %v1274 = vcvt.s32.f32 %v1258
      %v1275 = vcvt.s32.f32 %v1259
      %v1276 = vcvt.s32.f32 %v1260
      %v1277 = vcvt.s32.f32 %v1261
      %v1278 = vcvt.s32.f32 %v1262
      %v1279 = vcvt.s32.f32 %v1263
      %v1280 = vcvt.s32.f32 %v1264
      %v1281 = vcvt.s32.f32 %v1265
      %v1282 = vcvt.s32.f32 %v1266
      %v1283 = vcvt.s32.f32 %v1267
      %v1284 = vcvt.s32.f32 %v1268
      %v1285 = vcvt.s32.f32 %v1269
      %v1286 = vcvt.s32.f32 %v1270
      %v1287 = vsub.f32 %v1192, %v698
      %v1288 = vsub.f32 %v1195, %v698
      %v1289 = vsub.f32 %v1198, %v699
      %v1290 = vsub.f32 %v1201, %v699
      %v1291 = vsub.f32 %v1204, %v700
      %v1292 = vsub.f32 %v1207, %v700
      %v1293 = vsub.f32 %v1210, %v701
      %v1294 = vsub.f32 %v1213, %v701
      %v1295 = vsub.f32 %v1216, %v702
      %v1296 = vsub.f32 %v1219, %v702
      %v1297 = vsub.f32 %v1222, %v703
      %v1298 = vsub.f32 %v1225, %v703
      %v1299 = vsub.f32 %v1228, %v704
      %v1300 = vsub.f32 %v1231, %v704
      %v1301 = vsub.f32 %v1234, %v705
      %v1302 = vsub.f32 %v1237, %v705
      %1304 = vset.pattern.permute.xlu0 0
      %1305 = vperm.xlu0 %1304, %v1271
      %v1306 = vpop.permute.xlu0 %1305
      %1309 = vset.pattern.permute.xlu0 0
      %1310 = vperm.xlu0 %1309, %v1272
      %v1311 = vpop.permute.xlu0 %1310
      %1314 = vset.pattern.permute.xlu0 0
      %1315 = vperm.xlu0 %1314, %v1273
      %v1316 = vpop.permute.xlu0 %1315
      %1319 = vset.pattern.permute.xlu0 0
      %1320 = vperm.xlu0 %1319, %v1274
      %v1321 = vpop.permute.xlu0 %1320
      %1324 = vset.pattern.permute.xlu0 0
      %1325 = vperm.xlu0 %1324, %v1275
      %v1326 = vpop.permute.xlu0 %1325
      %1329 = vset.pattern.permute.xlu0 0
      %1330 = vperm.xlu0 %1329, %v1276
      %v1331 = vpop.permute.xlu0 %1330
      %1334 = vset.pattern.permute.xlu0 0
      %1335 = vperm.xlu0 %1334, %v1277
      %v1336 = vpop.permute.xlu0 %1335
      %1339 = vset.pattern.permute.xlu0 0
      %1340 = vperm.xlu0 %1339, %v1278
      %v1341 = vpop.permute.xlu0 %1340
      %1344 = vset.pattern.permute.xlu0 0
      %1345 = vperm.xlu0 %1344, %v1279
      %v1346 = vpop.permute.xlu0 %1345
      %1349 = vset.pattern.permute.xlu0 0
      %1350 = vperm.xlu0 %1349, %v1280
      %v1351 = vpop.permute.xlu0 %1350
      %1354 = vset.pattern.permute.xlu0 0
      %1355 = vperm.xlu0 %1354, %v1281
      %v1356 = vpop.permute.xlu0 %1355
      %1359 = vset.pattern.permute.xlu0 0
      %1360 = vperm.xlu0 %1359, %v1282
      %v1361 = vpop.permute.xlu0 %1360
      %1364 = vset.pattern.permute.xlu0 0
      %1365 = vperm.xlu0 %1364, %v1283
      %v1366 = vpop.permute.xlu0 %1365
      %1369 = vset.pattern.permute.xlu0 0
      %1370 = vperm.xlu0 %1369, %v1284
      %v1371 = vpop.permute.xlu0 %1370
      %1374 = vset.pattern.permute.xlu0 0
      %1375 = vperm.xlu0 %1374, %v1285
      %v1376 = vpop.permute.xlu0 %1375
      %1379 = vset.pattern.permute.xlu0 0
      %1380 = vperm.xlu0 %1379, %v1286
      %v1381 = vpop.permute.xlu0 %1380
      %v1383 = vmul.f32 %v1287, %v1306
      %v1384 = vmul.f32 %v1288, %v1311
      %v1385 = vmul.f32 %v1289, %v1316
      %v1386 = vmul.f32 %v1290, %v1321
      %v1387 = vmul.f32 %v1291, %v1326
      %v1388 = vmul.f32 %v1292, %v1331
      %v1389 = vmul.f32 %v1293, %v1336
      %v1390 = vmul.f32 %v1294, %v1341
      %v1391 = vmul.f32 %v1295, %v1346
      %v1392 = vmul.f32 %v1296, %v1351
      %v1393 = vmul.f32 %v1297, %v1356
      %v1394 = vmul.f32 %v1298, %v1361
      %v1395 = vmul.f32 %v1299, %v1366
      %v1396 = vmul.f32 %v1300, %v1371
      %v1397 = vmul.f32 %v1301, %v1376
      %v1398 = vmul.f32 %v1302, %v1381
      %v1399 = vpack.c.bf16 %v1384, %v1383
      %v1400 = vpack.c.bf16 %v1386, %v1385
      %v1401 = vpack.c.bf16 %v1388, %v1387
      %v1402 = vpack.c.bf16 %v1390, %v1389
      %v1403 = vpack.c.bf16 %v1392, %v1391
      %v1404 = vpack.c.bf16 %v1394, %v1393
      %v1405 = vpack.c.bf16 %v1396, %v1395
      %v1406 = vpack.c.bf16 %v1398, %v1397
      %v1407 = vld [vmem:[%s8] sm:$0x7]
      %v1408 = vld [vmem:[%s9] sm:$0x1]
      %v1410 = vperm.slane %v1408, 0
      %v1413 = vsel %vm779, %v1399, 0
      %v1416 = vsel %vm779, %v1400, 0
      %v1419 = vsel %vm779, %v1401, 0
      %v1422 = vsel %vm779, %v1402, 0
      %v1425 = vsel %vm779, %v1403, 0
      %v1428 = vsel %vm779, %v1404, 0
      %v1431 = vsel %vm779, %v1405, 0
      %v1434 = vsel %vm779, %v1406, 0
      %v1437 = vsel %vm792, %v1407, 0
      %1439 = vmatpush.bf16.msra.mxu0 0
      %1440 = vmatpush.bf16.msra.mxu0 0
      %1441 = vmatpush.bf16.msra.mxu0 0
      %1442 = vmatpush.bf16.msra.mxu0 0
      %1443 = vmatpush.bf16.msra.mxu0 0
      %1444 = vmatpush.bf16.msra.mxu0 0
      %1445 = vmatpush.bf16.msra.mxu0 0
      %1446 = vmatpush.bf16.msra.mxu0 %v1437
      %1447 = vmatmul.bf16.gmra.mxu0 %v1413
      %v1448 = vpop.f32.mrf.mxu0
      %v1449 = vadd.f32 %v1410, %v1448
      %v1450 = vpop.f32.mrf.mxu0
      %v1451 = vadd.f32 %v1410, %v1450
      %1452 = vmatmul.bf16.gmra.mxu0 %v1416
      %v1453 = vpop.f32.mrf.mxu0
      %v1454 = vadd.f32 %v1410, %v1453
      %v1455 = vpop.f32.mrf.mxu0
      %v1456 = vadd.f32 %v1410, %v1455
      %1457 = vmatmul.bf16.gmra.mxu0 %v1419
      %v1458 = vpop.f32.mrf.mxu0
      %v1459 = vadd.f32 %v1410, %v1458
      %v1460 = vpop.f32.mrf.mxu0
      %v1461 = vadd.f32 %v1410, %v1460
      %1462 = vmatmul.bf16.gmra.mxu0 %v1422
      %v1463 = vpop.f32.mrf.mxu0
      %v1464 = vadd.f32 %v1410, %v1463
      %v1465 = vpop.f32.mrf.mxu0
      %v1466 = vadd.f32 %v1410, %v1465
      %1467 = vmatmul.bf16.gmra.mxu0 %v1425
      %v1468 = vpop.f32.mrf.mxu0
      %v1469 = vadd.f32 %v1410, %v1468
      %v1470 = vpop.f32.mrf.mxu0
      %v1471 = vadd.f32 %v1410, %v1470
      %1472 = vmatmul.bf16.gmra.mxu0 %v1428
      %v1473 = vpop.f32.mrf.mxu0
      %v1474 = vadd.f32 %v1410, %v1473
      %v1475 = vpop.f32.mrf.mxu0
      %v1476 = vadd.f32 %v1410, %v1475
      %1477 = vmatmul.bf16.gmra.mxu0 %v1431
      %v1478 = vpop.f32.mrf.mxu0
      %v1479 = vadd.f32 %v1410, %v1478
      %v1480 = vpop.f32.mrf.mxu0
      %v1481 = vadd.f32 %v1410, %v1480
      %1482 = vmatmul.bf16.gmra.mxu0 %v1434
      %v1483 = vpop.f32.mrf.mxu0
      %v1484 = vadd.f32 %v1410, %v1483
      %v1485 = vpop.f32.mrf.mxu0
      %v1486 = vadd.f32 %v1410, %v1485
      %1487 = vdwg.mxu0
      %v1488 = vmax.f32 %v1449, 0.0
      %v1489 = vmax.f32 %v1451, 0.0
      %v1490 = vmax.f32 %v1454, 0.0
      %v1491 = vmax.f32 %v1456, 0.0
      %v1492 = vmax.f32 %v1459, 0.0
      %v1493 = vmax.f32 %v1461, 0.0
      %v1494 = vmax.f32 %v1464, 0.0
      %v1495 = vmax.f32 %v1466, 0.0
      %v1496 = vmax.f32 %v1469, 0.0
      %v1497 = vmax.f32 %v1471, 0.0
      %v1498 = vmax.f32 %v1474, 0.0
      %v1499 = vmax.f32 %v1476, 0.0
      %v1500 = vmax.f32 %v1479, 0.0
      %v1501 = vmax.f32 %v1481, 0.0
      %v1502 = vmax.f32 %v1484, 0.0
      %v1503 = vmax.f32 %v1486, 0.0
      %v1504 = vpack.c.bf16 %v1489, %v1488
      %v1505 = vpack.c.bf16 %v1491, %v1490
      %v1506 = vpack.c.bf16 %v1493, %v1492
      %v1507 = vpack.c.bf16 %v1495, %v1494
      %v1508 = vpack.c.bf16 %v1497, %v1496
      %v1509 = vpack.c.bf16 %v1499, %v1498
      %v1510 = vpack.c.bf16 %v1501, %v1500
      %v1511 = vpack.c.bf16 %v1503, %v1502
      %v1512 = vld [vmem:[%s10] sm:$0xf]
      %v1513 = vld [vmem:[%s10 + $0x4] sm:$0xf]
      %v1514 = vld [vmem:[%s10 + $0x8] sm:$0xf]
      %v1515 = vld [vmem:[%s10 + $0xc] sm:$0xf]
      %v1516 = vld [vmem:[%s10 + $0x10] sm:$0xf]
      %v1517 = vld [vmem:[%s10 + $0x14] sm:$0xf]
      %v1518 = vld [vmem:[%s10 + $0x18] sm:$0xf]
      %v1519 = vld [vmem:[%s10 + $0x1c] sm:$0xf]
      %v1520 = vld [vmem:[%s10 + $0x20] sm:$0xf]
      %v1521 = vld [vmem:[%s10 + $0x24] sm:$0xf]
      %v1522 = vld [vmem:[%s10 + $0x28] sm:$0xf]
      %v1523 = vld [vmem:[%s10 + $0x2c] sm:$0xf]
      %v1524 = vld [vmem:[%s10 + $0x30] sm:$0xf]
      %v1525 = vld [vmem:[%s10 + $0x34] sm:$0xf]
      %v1526 = vld [vmem:[%s10 + $0x38] sm:$0xf]
      %v1527 = vld [vmem:[%s10 + $0x3c] sm:$0xf]
      %v1528 = vld [vmem:[%s11] sm:$0x1]
      %v1530 = vperm.slane %v1528, 0
      %v1548 = vunpack.c.l.b16 %v1512
      %v1549 = vunpack.c.l.b16 %v1513
      %v1550 = vunpack.c.l.b16 %v1514
      %v1551 = vunpack.c.l.b16 %v1515
      %v1552 = vunpack.c.l.b16 %v1516
      %v1553 = vunpack.c.l.b16 %v1517
      %v1554 = vunpack.c.l.b16 %v1518
      %v1555 = vunpack.c.l.b16 %v1519
      %v1556 = vunpack.c.l.b16 %v1520
      %v1557 = vunpack.c.l.b16 %v1521
      %v1558 = vunpack.c.l.b16 %v1522
      %v1559 = vunpack.c.l.b16 %v1523
      %v1560 = vunpack.c.l.b16 %v1524
      %v1561 = vunpack.c.l.b16 %v1525
      %v1562 = vunpack.c.l.b16 %v1526
      %v1563 = vunpack.c.l.b16 %v1527
      %v1564 = vpack.c.b16 %v1549, %v1548
      %v1565 = vpack.c.b16 %v1551, %v1550
      %v1566 = vpack.c.b16 %v1553, %v1552
      %v1567 = vpack.c.b16 %v1555, %v1554
      %v1568 = vpack.c.b16 %v1557, %v1556
      %v1569 = vpack.c.b16 %v1559, %v1558
      %v1570 = vpack.c.b16 %v1561, %v1560
      %v1571 = vpack.c.b16 %v1563, %v1562
      %1580 = vmatpush.bf16.msra.mxu0 %v1571
      %1581 = vmatpush.bf16.msra.mxu0 %v1570
      %1582 = vmatpush.bf16.msra.mxu0 %v1569
      %1583 = vmatpush.bf16.msra.mxu0 %v1568
      %1584 = vmatpush.bf16.msra.mxu0 %v1567
      %1585 = vmatpush.bf16.msra.mxu0 %v1566
      %1586 = vmatpush.bf16.msra.mxu0 %v1565
      %1587 = vmatpush.bf16.msra.mxu0 %v1564
      %1588 = vmatmul.bf16.gmra.mxu0 %v1504
      %v1589 = vpop.f32.mrf.mxu0
      %v1590 = vadd.f32 %v1530, %v1589
      %v1591 = vpop.f32.mrf.mxu0
      %v1592 = vadd.f32 %v1530, %v1591
      %1593 = vmatmul.bf16.gmra.mxu0 %v1505
      %v1594 = vpop.f32.mrf.mxu0
      %v1595 = vadd.f32 %v1530, %v1594
      %v1596 = vpop.f32.mrf.mxu0
      %v1597 = vadd.f32 %v1530, %v1596
      %1598 = vmatmul.bf16.gmra.mxu0 %v1506
      %v1599 = vpop.f32.mrf.mxu0
      %v1600 = vadd.f32 %v1530, %v1599
      %v1601 = vpop.f32.mrf.mxu0
      %v1602 = vadd.f32 %v1530, %v1601
      %1603 = vmatmul.bf16.gmra.mxu0 %v1507
      %v1604 = vpop.f32.mrf.mxu0
      %v1605 = vadd.f32 %v1530, %v1604
      %v1606 = vpop.f32.mrf.mxu0
      %v1607 = vadd.f32 %v1530, %v1606
      %1608 = vmatmul.bf16.gmra.mxu0 %v1508
      %v1609 = vpop.f32.mrf.mxu0
      %v1610 = vadd.f32 %v1530, %v1609
      %v1611 = vpop.f32.mrf.mxu0
      %v1612 = vadd.f32 %v1530, %v1611
      %1613 = vmatmul.bf16.gmra.mxu0 %v1509
      %v1614 = vpop.f32.mrf.mxu0
      %v1615 = vadd.f32 %v1530, %v1614
      %v1616 = vpop.f32.mrf.mxu0
      %v1617 = vadd.f32 %v1530, %v1616
      %1618 = vmatmul.bf16.gmra.mxu0 %v1510
      %v1619 = vpop.f32.mrf.mxu0
      %v1620 = vadd.f32 %v1530, %v1619
      %v1621 = vpop.f32.mrf.mxu0
      %v1622 = vadd.f32 %v1530, %v1621
      %1623 = vmatmul.bf16.gmra.mxu0 %v1511
      %v1624 = vpop.f32.mrf.mxu0
      %v1625 = vadd.f32 %v1530, %v1624
      %v1626 = vpop.f32.mrf.mxu0
      %v1627 = vadd.f32 %v1530, %v1626
      %1628 = vdwg.mxu0
      %v1629 = vmax.f32 %v1590, 0.0
      %v1630 = vmax.f32 %v1592, 0.0
      %v1631 = vmax.f32 %v1595, 0.0
      %v1632 = vmax.f32 %v1597, 0.0
      %v1633 = vmax.f32 %v1600, 0.0
      %v1634 = vmax.f32 %v1602, 0.0
      %v1635 = vmax.f32 %v1605, 0.0
      %v1636 = vmax.f32 %v1607, 0.0
      %v1637 = vmax.f32 %v1610, 0.0
      %v1638 = vmax.f32 %v1612, 0.0
      %v1639 = vmax.f32 %v1615, 0.0
      %v1640 = vmax.f32 %v1617, 0.0
      %v1641 = vmax.f32 %v1620, 0.0
      %v1642 = vmax.f32 %v1622, 0.0
      %v1643 = vmax.f32 %v1625, 0.0
      %v1644 = vmax.f32 %v1627, 0.0
      %v1645 = vmax.f32 %v1629, %v1630
      %v1646 = vrot.slane %v1645, 4
      %v1647 = vmax.f32 %v1645, %v1646
      %v1648 = vrot.slane %v1647, 2
      %v1649 = vmax.f32 %v1647, %v1648
      %v1650 = vrot.slane %v1649, 1
      %v1651 = vmax.f32 %v1649, %v1650
      %v1652 = vmax.f32 %v1631, %v1632
      %v1653 = vrot.slane %v1652, 4
      %v1654 = vmax.f32 %v1652, %v1653
      %v1655 = vrot.slane %v1654, 2
      %v1656 = vmax.f32 %v1654, %v1655
      %v1657 = vrot.slane %v1656, 1
      %v1658 = vmax.f32 %v1656, %v1657
      %v1659 = vmax.f32 %v1633, %v1634
      %v1660 = vrot.slane %v1659, 4
      %v1661 = vmax.f32 %v1659, %v1660
      %v1662 = vrot.slane %v1661, 2
      %v1663 = vmax.f32 %v1661, %v1662
      %v1664 = vrot.slane %v1663, 1
      %v1665 = vmax.f32 %v1663, %v1664
      %v1666 = vmax.f32 %v1635, %v1636
      %v1667 = vrot.slane %v1666, 4
      %v1668 = vmax.f32 %v1666, %v1667
      %v1669 = vrot.slane %v1668, 2
      %v1670 = vmax.f32 %v1668, %v1669
      %v1671 = vrot.slane %v1670, 1
      %v1672 = vmax.f32 %v1670, %v1671
      %v1673 = vmax.f32 %v1637, %v1638
      %v1674 = vrot.slane %v1673, 4
      %v1675 = vmax.f32 %v1673, %v1674
      %v1676 = vrot.slane %v1675, 2
      %v1677 = vmax.f32 %v1675, %v1676
      %v1678 = vrot.slane %v1677, 1
      %v1679 = vmax.f32 %v1677, %v1678
      %v1680 = vmax.f32 %v1639, %v1640
      %v1681 = vrot.slane %v1680, 4
      %v1682 = vmax.f32 %v1680, %v1681
      %v1683 = vrot.slane %v1682, 2
      %v1684 = vmax.f32 %v1682, %v1683
      %v1685 = vrot.slane %v1684, 1
      %v1686 = vmax.f32 %v1684, %v1685
      %v1687 = vmax.f32 %v1641, %v1642
      %v1688 = vrot.slane %v1687, 4
      %v1689 = vmax.f32 %v1687, %v1688
      %v1690 = vrot.slane %v1689, 2
      %v1691 = vmax.f32 %v1689, %v1690
      %v1692 = vrot.slane %v1691, 1
      %v1693 = vmax.f32 %v1691, %v1692
      %v1694 = vmax.f32 %v1643, %v1644
      %v1695 = vrot.slane %v1694, 4
      %v1696 = vmax.f32 %v1694, %v1695
      %v1697 = vrot.slane %v1696, 2
      %v1698 = vmax.f32 %v1696, %v1697
      %v1699 = vrot.slane %v1698, 1
      %v1700 = vmax.f32 %v1698, %v1699
      %v1709 = vsel %vm998, %v1658, %v1651
      %v1710 = vsel %vm1000, %v1665, %v1709
      %v1711 = vsel %vm1002, %v1672, %v1710
      %v1712 = vsel %vm1004, %v1679, %v1711
      %v1713 = vsel %vm1006, %v1686, %v1712
      %v1714 = vsel %vm1008, %v1693, %v1713
      %v1715 = vsel %vm1010, %v1700, %v1714
      %1717 = vst [vmem:[%s535 + $0x8] sm:$0xff] %v1715
      %p1718 = scmp.lt.s32.totalorder %s27, 1
      %s1719 = scalar_select %p1718, %s27, 1
      %p1720 = scmp.lt.s32.totalorder %s28, 0
      %s1721 = scalar_select %p1720, %s28, 0
      %s1722 = smul.addr %s1721, 2
      %s1723 = smul.addr %s1719, 2
      %s1724 = sadd.s32 %s1722, %s1723
      %s1725 = smul.addr %s1724, 8
      %s1726 = scalar_lea.vmem %s12, %s1725
      // Predicated region
      $region69: #{a_call__.1} parent=67 // pred_check
        %p1727 = pneg %p333
      $region70: #{a_call__.1} parent=67 // pred_check_branch
        %1729 = sbr.rel (%p1727) target = $region72
      $region71: #{a_call__.1} parent=67 // pred_region
        _
      $region72: #{a_call__.1} parent=67 // pred_fallthru
        _
    $region68: #{a_call__.1} parent=5 // pred_fallthru
      _
    %p1730 = scmp.le.s32.totalorder 2, %s18
    // Predicated region
    $region73: #{a_call__.1} parent=5 // pred_check
      %p1731 = pneg %p1730
    $region74: #{a_call__.1} parent=5 // pred_check_branch
      %1733 = sbr.rel (%p1731) target = $region76
    $region75: #{a_call__.1} parent=5 // pred_region
      %s1734 = ssub.s32 %s18, 2
      // Predicated region
      $region77: #{a_call__.1} parent=75 // pred_check
        %p1735 = pneg %p339
      $region78: #{a_call__.1} parent=75 // pred_check_branch
        %1737 = sbr.rel (%p1735) target = $region80
      $region79: #{a_call__.1} parent=75 // pred_region
        %p1738 = scmp.lt.s32.totalorder %s29, 1
        %s1739 = scalar_select %p1738, %s29, 1
        %p1740 = scmp.lt.s32.totalorder %s30, 0
        %s1741 = scalar_select %p1740, %s30, 0
        %s1742 = smul.addr %s1741, 2
        %s1743 = smul.addr %s1739, 2
        %s1744 = sadd.s32 %s1742, %s1743
        %s1745 = smul.addr %s1744, 8
        %s1746 = scalar_lea.vmem %s12, %s1745
      $region80: #{a_call__.1} parent=75 // pred_fallthru
        _
    $region76: #{a_call__.1} parent=5 // pred_fallthru
      _
  $region6: #{a_call__.1} parent=0 // loop_footer
    %s22 = sadd.s32 1, %s18
  $region7: #{a_call__.1} parent=0 // loop_footer_branch
    %17 = sbr.rel target = $region3
  $region8: #{a_call__.1} parent=0 // loop_exit
    _

</llo_original>
